<compile_context>
chip_gen: v7x
topology: tpu7x:2x2x1
jax: 0.10.0
libtpu: 0.0.40
codegen_flags: <defaults>
</compile_context>

<pallas_src>
import jax
import jax.numpy as jnp
from jax import lax
from jax.experimental import pallas as pl
from jax.experimental.pallas import tpu as pltpu


# ----------------------------------------------------------------------------
# small helpers
# ----------------------------------------------------------------------------
def _round_up(x, m):
    return (x + m - 1) // m * m


def _lane(c):
    """VMEM lane footprint of a minor dim (pads to 128 lanes)."""
    return _round_up(max(int(c), 1), 128)


def _sub(s):
    """VMEM sublane footprint of a second-minor dim (conservative: 16)."""
    return _round_up(max(int(s), 1), 16)


def _vmem_capacity_bytes():
    try:
        return int(pltpu.get_tpu_info().vmem_capacity_bytes)
    except Exception:
        return 64 << 20          # v7x-sized fallback: safe on every generation


# ----------------------------------------------------------------------------
# Pallas kernel: fused Conv2d 3x3 (on channel-concatenated input) + BN + ReLU
# ----------------------------------------------------------------------------
def _conv_bn_relu_kernel(x_ref, w_ref, scale_ref, bias_ref, o_ref):
    """One (batch, H-tile) grid step.

    x_ref     : (Hout+2, W+2, Cin) bf16  full spatially padded image, kept
                                         VMEM-resident across the h axis
    w_ref     : (9*Cin, Coutp)     bf16  taps flattened as (ky, kx, cin)
    scale_ref : (1, Coutp)         f32   gamma / sqrt(var + eps)
    bias_ref  : (1, Coutp)         f32   beta - mean * scale
    o_ref     : (TH*W, Coutp)      f32   output rows h*TH..h*TH+TH-1, W-major
    """
    M, Coutp = o_ref.shape
    Cin = x_ref.shape[-1]
    W = x_ref.shape[-2] - 2
    TH = M // W
    h = pl.program_id(1)

    # TH is a multiple of 8 by construction -> aligned start hint.
    row0 = pl.multiple_of(h * TH, 8)
    slab = x_ref[pl.ds(row0, TH + 2), :, :]             # (TH+2, W+2, Cin)

    # Nine shifted views of the tile (conv over the channel concat == one conv
    # over the merged Cin), flattened once and reused by every M-chunk.
    taps = [slab[ky:ky + TH, kx:kx + W, :].reshape(M, Cin)
            for ky in range(3) for kx in range(3)]
    wts = [w_ref[t * Cin:(t + 1) * Cin, :] for t in range(9)]

    sc = scale_ref[...]
    bs = bias_ref[...]

    # Chunk M so the f32 accumulator stays register-resident (<= ~128 KiB).
    MC = max(8, ((256 * 128) // _lane(Coutp)) // 8 * 8)
    for m0 in range(0, M, MC):
        mc = min(MC, M - m0)
        acc = jnp.zeros((mc, Coutp), jnp.float32)
        for t in range(9):
            acc = acc + jnp.dot(taps[t][m0:m0 + mc, :], wts[t],
                                preferred_element_type=jnp.float32)
        y = acc * sc + bs                                # fused BN (eval) epilogue
        o_ref[m0:m0 + mc, :] = jnp.maximum(y, 0.0).astype(o_ref.dtype)


# ----------------------------------------------------------------------------
# pallas_call wrapper
# ----------------------------------------------------------------------------
def _vmem_estimate(Hin, Wp, Cin, TH, W, Coutp):
    """(8/16,128)-padding-aware VMEM estimate for one grid step."""
    M = TH * W
    x_bytes = 2 * Hin * _sub(Wp) * _lane(Cin) * 2        # resident image, 2-buffered, bf16
    w_bytes = 2 * _sub(9 * Cin) * _lane(Coutp) * 2
    sb_bytes = 2 * 2 * 16 * _lane(Coutp) * 4
    out_bytes = 2 * _sub(M) * _lane(Coutp) * 4           # f32 output tile, 2-buffered
    tmp_bytes = _sub(M) * (10 * _lane(Cin) * 2           # slab + nine tap copies
                           + 3 * _lane(Coutp) * 4)       # accumulator / epilogue temps
    return x_bytes + w_bytes + sb_bytes + out_bytes + tmp_bytes


def _conv_bn_relu_pallas(x, w, scale, bias, *, TH, nh, W, Coutp):
    N, Hin, Wp, Cin = x.shape
    M = TH * W

    est = _vmem_estimate(Hin, Wp, Cin, TH, W, Coutp)
    cap = _vmem_capacity_bytes()
    vmem_limit = int(min(max(est + (8 << 20), 32 << 20), (cap * 3) // 4))
    # TODO(synk): for feature maps whose padded NHWC slab exceeds this VMEM
    # budget, switch to per-tile halo DMA from HBM (memory_space=pl.ANY).

    return pl.pallas_call(
        _conv_bn_relu_kernel,
        out_shape=jax.ShapeDtypeStruct((N, nh * M, Coutp), jnp.float32),
        grid=(N, nh),
        in_specs=[
            pl.BlockSpec((None, Hin, Wp, Cin), lambda n, h: (n, 0, 0, 0)),
            pl.BlockSpec((9 * Cin, Coutp), lambda n, h: (0, 0)),
            pl.BlockSpec((1, Coutp), lambda n, h: (0, 0)),
            pl.BlockSpec((1, Coutp), lambda n, h: (0, 0)),
        ],
        out_specs=pl.BlockSpec((None, M, Coutp), lambda n, h: (n, h, 0)),
        compiler_params=pltpu.CompilerParams(
            dimension_semantics=("parallel", "parallel"),
            vmem_limit_bytes=vmem_limit),
    )(x, w, scale, bias)


# ----------------------------------------------------------------------------
# Bilinear upsample (align_corners=True) via small interpolation matmuls
# ----------------------------------------------------------------------------
def _interp_matrix(out_size, in_size, dtype=jnp.float32):
    """(out_size, in_size) matrix for 1-D bilinear interp, align_corners=True."""
    if out_size == 1:
        return jnp.zeros((1, in_size), dtype).at[0, 0].set(1.0)
    pos = jnp.arange(out_size, dtype=jnp.float32) * (
        (in_size - 1) / (out_size - 1))
    i0 = jnp.clip(jnp.floor(pos).astype(jnp.int32), 0, in_size - 1)
    i1 = jnp.clip(i0 + 1, 0, in_size - 1)
    w = pos - i0.astype(jnp.float32)
    return (jax.nn.one_hot(i0, in_size, dtype=dtype) * (1.0 - w)[:, None]
            + jax.nn.one_hot(i1, in_size, dtype=dtype) * w[:, None])


def upsample_bilinear_align_corners(x, scale_factor=2):
    """x: NCHW -> NCHW upsampled by integer scale_factor (align_corners=True)."""
    _, _, H, W = x.shape
    Ah = _interp_matrix(H * scale_factor, H)
    Aw = _interp_matrix(W * scale_factor, W)
    y = jnp.einsum("nchw,uh->ncuw", x, Ah)
    return jnp.einsum("ncuw,vw->ncuv", y, Aw)


def _pad_or_crop_hw(x_nhwc, top, bot, left, right):
    """F.pad semantics on the H/W dims of an NHWC tensor (negative pads crop)."""
    x = jnp.pad(x_nhwc, ((0, 0),
                         (max(top, 0), max(bot, 0)),
                         (max(left, 0), max(right, 0)),
                         (0, 0)))
    H, W = x.shape[1], x.shape[2]
    return x[:, -min(top, 0):H + min(bot, 0),
             -min(left, 0):W + min(right, 0), :]


# ----------------------------------------------------------------------------
# tiling heuristic
# ----------------------------------------------------------------------------
def _choose_tile_h(H, W, Cin, Coutp, n_batch, budget_bytes=6 << 20):
    """Largest multiple-of-8 H tile whose per-step working set fits the budget."""
    per_row = W * (10 * _lane(Cin) * 2       # bf16 slab + nine tap copies
                   + 3 * _lane(Coutp) * 4)   # f32 accumulator + 2-buffered out
    th = max(8, (int(budget_bytes // max(per_row, 1)) // 8) * 8)
    th = min(th, _round_up(H, 8))
    # make sure megacore / v7x's 2 TCs get at least 2 independent grid steps.
    if n_batch * pl.cdiv(H, th) < 2:
        th = max(8, _round_up(pl.cdiv(H, 2), 8))
    return th


# ----------------------------------------------------------------------------
# Up.forward
# ----------------------------------------------------------------------------
def up_forward(x1, x2, params, scale_factor=2, tile_h=None):
    """Matches Up.forward. x1 (low-res), x2 (high-res): NCHW float32."""
    N, C2, H, W = x2.shape
    C1 = x1.shape[1]
    Cin = C1 + C2
    Cout = params["gamma"].shape[0]

    # 1) bilinear upsample of x1 (align_corners=True).
    x1u = upsample_bilinear_align_corners(x1, scale_factor)

    # 2) NHWC; F.pad x1 to x2's spatial size (negative diff -> crop);
    #    channel concat fused into the prep pass (never materialized twice).
    x2n = jnp.transpose(x2, (0, 2, 3, 1))
    x1n = jnp.transpose(x1u, (0, 2, 3, 1))
    diffY = H - x1n.shape[1]
    diffX = W - x1n.shape[2]
    x1n = _pad_or_crop_hw(x1n, diffY // 2, diffY - diffY // 2,
                          diffX // 2, diffX - diffX // 2)
    x = jnp.concatenate([x2n, x1n], axis=-1)                 # (N, H, W, Cin) f32

    # 3) BatchNorm (eval mode, running stats) folded into scale/bias.
    eps = 1e-5
    scale = params["gamma"] / jnp.sqrt(params["running_var"] + eps)
    bias = params["beta"] - params["running_mean"] * scale

    # 4) channel / spatial tiling decisions.
    Coutp = Cout if Cout <= 128 else _round_up(Cout, 128)    # no 16x pad for small Cout
    TH = tile_h if tile_h is not None else _choose_tile_h(H, W, Cin, Coutp, N)
    TH = max(8, _round_up(int(TH), 8))
    nh = pl.cdiv(H, TH)
    Hout = nh * TH

    # 5) conv halo (+1 each side) and H rounding; single fused bf16 prep pass.
    x = jnp.pad(x, ((0, 0), (1, 1 + Hout - H), (1, 1), (0, 0))).astype(jnp.bfloat16)

    # 6) weights: OIHW -> HWIO -> (9*Cin, Cout), tap order (ky, kx, cin);
    #    pad Cout only when > 128; fused BN scale/bias alongside.
    w = jnp.transpose(params["w_oihw"], (2, 3, 1, 0)).reshape(9 * Cin, Cout)
    pad_c = Coutp - Cout
    w = jnp.pad(w, ((0, 0), (0, pad_c))).astype(jnp.bfloat16)
    scale_p = jnp.pad(scale, (0, pad_c), constant_values=1.0) \
        .reshape(1, Coutp).astype(jnp.float32)
    bias_p = jnp.pad(bias, (0, pad_c)).reshape(1, Coutp).astype(jnp.float32)

    y = _conv_bn_relu_pallas(x, w, scale_p, bias_p,
                             TH=TH, nh=nh, W=W, Coutp=Coutp)
    y = y.reshape(N, Hout, W, Coutp)[:, :H, :, :Cout]
    return jnp.transpose(y, (0, 3, 1, 2))                    # NCHW (module API)


def init_params(key, in_channels, out_channels):
    k1, k2, k3, k4, k5 = jax.random.split(key, 5)
    return {
        # PyTorch Conv2d weight layout: (Cout, Cin, 3, 3).
        "w_oihw": 0.1 * jax.random.normal(
            k1, (out_channels, in_channels, 3, 3), jnp.float32),
        "gamma": 1.0 + 0.1 * jax.random.normal(k2, (out_channels,), jnp.float32),
        "beta": 0.1 * jax.random.normal(k3, (out_channels,), jnp.float32),
        "running_mean": 0.1 * jax.random.normal(k4, (out_channels,), jnp.float32),
        "running_var": 1.0 + 0.1 * jax.random.uniform(k5, (out_channels,),
                                                      jnp.float32),
    }


# ----------------------------------------------------------------------------
# Self-check
# ----------------------------------------------------------------------------
if __name__ == "__main__":
    key = jax.random.PRNGKey(0)
    kx1, kx2, kp = jax.random.split(key, 3)

    N, C1, C2 = 2, 4, 4                          # in_channels = C2 + C1 = 8
    in_channels, out_channels = C2 + C1, 8
    H2, W2 = 16, 16
    H1, W1 = H2 // 2, W2 // 2

    x1 = jax.random.normal(kx1, (N, C1, H1, W1), jnp.float32)
    x2 = jax.random.normal(kx2, (N, C2, H2, W2), jnp.float32)
    params = init_params(kp, in_channels, out_channels)

    # Reference: same bf16 rounding of activations/weights as the kernel path.
    x1u = upsample_bilinear_align_corners(x1, 2)
    dY, dX = H2 - x1u.shape[2], W2 - x1u.shape[3]
    x1p = jnp.pad(x1u, ((0, 0), (0, 0),
                        (dY // 2, dY - dY // 2), (dX // 2, dX - dX // 2)))
    x_cat = jnp.concatenate([x2, x1p], axis=1)
    xb = x_cat.astype(jnp.bfloat16).astype(jnp.float32)
    wb = params["w_oihw"].astype(jnp.bfloat16).astype(jnp.float32)
    y_conv = lax.conv_general_dilated(
        xb, wb, (1, 1), ((1, 1), (1, 1)),
        dimension_numbers=("NCHW", "OIHW", "NCHW"),
        precision=lax.Precision.HIGHEST)
    eps = 1e-5
    scale = params["gamma"] / jnp.sqrt(params["running_var"] + eps)
    bias = params["beta"] - params["running_mean"] * scale
    y_ref = jnp.maximum(
        y_conv * scale[None, :, None, None] + bias[None, :, None, None], 0.0)

    fwd = jax.jit(up_forward, static_argnames=("scale_factor", "tile_h"))

    # default tiling (single H tile at this size)
    y0 = jax.block_until_ready(fwd(x1, x2, params))
    assert y0.shape == (N, out_channels, H2, W2), y0.shape
    # forced multi-tile path (exercises the h grid axis / halo row slicing)
    y1 = jax.block_until_ready(fwd(x1, x2, params, tile_h=8))
    assert y1.shape == (N, out_channels, H2, W2), y1.shape

    for y in (y0, y1):
        err = float(jnp.max(jnp.abs(y - y_ref)))
        assert jnp.allclose(y, y_ref, atol=2e-2, rtol=2e-2), err

    print("KERNEL_OK")
</pallas_src>

<mosaic_0001>
module attributes {stable_mosaic.version = 11 : i64} {
  func.func @_conv_bn_relu_kernel(%arg0: i32, %arg1: i32, %arg2: memref<1x18x18x8xbf16, #tpu.memory_space<vmem>>, %arg3: memref<72x8xbf16, #tpu.memory_space<vmem>>, %arg4: memref<1x8xf32, #tpu.memory_space<vmem>>, %arg5: memref<1x8xf32, #tpu.memory_space<vmem>>, %arg6: memref<1x256x8xf32, #tpu.memory_space<vmem>>) attributes {dimension_semantics = [#tpu.dimension_semantics<parallel>, #tpu.dimension_semantics<parallel>], iteration_bounds = array<i64: 2, 1>, scalar_prefetch = 0 : i64, scratch_operands = 0 : i64, tpu.core_type = #tpu.core_type<tc>, window_params = [{transform_indices = @transform_0, window_bounds = array<i64: 1, 18, 18, 8>}, {pipeline_mode = #tpu.pipeline_mode<synchronous>, transform_indices = @transform_1, window_bounds = array<i64: 72, 8>}, {pipeline_mode = #tpu.pipeline_mode<synchronous>, transform_indices = @transform_2, window_bounds = array<i64: 1, 8>}, {pipeline_mode = #tpu.pipeline_mode<synchronous>, transform_indices = @transform_3, window_bounds = array<i64: 1, 8>}, {transform_indices = @transform_4, window_bounds = array<i64: 1, 256, 8>}]} {
    %c16_i32 = arith.constant 16 : i32
    %0 = arith.muli %arg1, %c16_i32 : i32
    %1 = tpu.assume_multiple %0, 8 : i32
    %c0 = arith.constant 0 : index
    %2 = arith.index_cast %1 : i32 to index
    %c0_0 = arith.constant 0 : index
    %c0_1 = arith.constant 0 : index
    %3 = vector.load %arg2[%c0, %2, %c0_0, %c0_1] : memref<1x18x18x8xbf16, #tpu.memory_space<vmem>>, vector<1x18x18x8xbf16>
    %4 = vector.shape_cast %3 : vector<1x18x18x8xbf16> to vector<18x18x8xbf16>
    %5 = vector.extract_strided_slice %4 {offsets = [0, 0, 0], sizes = [16, 16, 8], strides = [1, 1, 1]} : vector<18x18x8xbf16> to vector<16x16x8xbf16>
    %6 = vector.shape_cast %5 : vector<16x16x8xbf16> to vector<256x8xbf16>
    %7 = vector.extract_strided_slice %4 {offsets = [0, 1, 0], sizes = [16, 16, 8], strides = [1, 1, 1]} : vector<18x18x8xbf16> to vector<16x16x8xbf16>
    %8 = vector.shape_cast %7 : vector<16x16x8xbf16> to vector<256x8xbf16>
    %9 = vector.extract_strided_slice %4 {offsets = [0, 2, 0], sizes = [16, 16, 8], strides = [1, 1, 1]} : vector<18x18x8xbf16> to vector<16x16x8xbf16>
    %10 = vector.shape_cast %9 : vector<16x16x8xbf16> to vector<256x8xbf16>
    %11 = vector.extract_strided_slice %4 {offsets = [1, 0, 0], sizes = [16, 16, 8], strides = [1, 1, 1]} : vector<18x18x8xbf16> to vector<16x16x8xbf16>
    %12 = vector.shape_cast %11 : vector<16x16x8xbf16> to vector<256x8xbf16>
    %13 = vector.extract_strided_slice %4 {offsets = [1, 1, 0], sizes = [16, 16, 8], strides = [1, 1, 1]} : vector<18x18x8xbf16> to vector<16x16x8xbf16>
    %14 = vector.shape_cast %13 : vector<16x16x8xbf16> to vector<256x8xbf16>
    %15 = vector.extract_strided_slice %4 {offsets = [1, 2, 0], sizes = [16, 16, 8], strides = [1, 1, 1]} : vector<18x18x8xbf16> to vector<16x16x8xbf16>
    %16 = vector.shape_cast %15 : vector<16x16x8xbf16> to vector<256x8xbf16>
    %17 = vector.extract_strided_slice %4 {offsets = [2, 0, 0], sizes = [16, 16, 8], strides = [1, 1, 1]} : vector<18x18x8xbf16> to vector<16x16x8xbf16>
    %18 = vector.shape_cast %17 : vector<16x16x8xbf16> to vector<256x8xbf16>
    %19 = vector.extract_strided_slice %4 {offsets = [2, 1, 0], sizes = [16, 16, 8], strides = [1, 1, 1]} : vector<18x18x8xbf16> to vector<16x16x8xbf16>
    %20 = vector.shape_cast %19 : vector<16x16x8xbf16> to vector<256x8xbf16>
    %21 = vector.extract_strided_slice %4 {offsets = [2, 2, 0], sizes = [16, 16, 8], strides = [1, 1, 1]} : vector<18x18x8xbf16> to vector<16x16x8xbf16>
    %22 = vector.shape_cast %21 : vector<16x16x8xbf16> to vector<256x8xbf16>
    %c0_2 = arith.constant 0 : index
    %c0_3 = arith.constant 0 : index
    %23 = vector.load %arg3[%c0_2, %c0_3] : memref<72x8xbf16, #tpu.memory_space<vmem>>, vector<8x8xbf16>
    %c8 = arith.constant 8 : index
    %c0_4 = arith.constant 0 : index
    %24 = vector.load %arg3[%c8, %c0_4] : memref<72x8xbf16, #tpu.memory_space<vmem>>, vector<8x8xbf16>
    %c16 = arith.constant 16 : index
    %c0_5 = arith.constant 0 : index
    %25 = vector.load %arg3[%c16, %c0_5] : memref<72x8xbf16, #tpu.memory_space<vmem>>, vector<8x8xbf16>
    %c24 = arith.constant 24 : index
    %c0_6 = arith.constant 0 : index
    %26 = vector.load %arg3[%c24, %c0_6] : memref<72x8xbf16, #tpu.memory_space<vmem>>, vector<8x8xbf16>
    %c32 = arith.constant 32 : index
    %c0_7 = arith.constant 0 : index
    %27 = vector.load %arg3[%c32, %c0_7] : memref<72x8xbf16, #tpu.memory_space<vmem>>, vector<8x8xbf16>
    %c40 = arith.constant 40 : index
    %c0_8 = arith.constant 0 : index
    %28 = vector.load %arg3[%c40, %c0_8] : memref<72x8xbf16, #tpu.memory_space<vmem>>, vector<8x8xbf16>
    %c48 = arith.constant 48 : index
    %c0_9 = arith.constant 0 : index
    %29 = vector.load %arg3[%c48, %c0_9] : memref<72x8xbf16, #tpu.memory_space<vmem>>, vector<8x8xbf16>
    %c56 = arith.constant 56 : index
    %c0_10 = arith.constant 0 : index
    %30 = vector.load %arg3[%c56, %c0_10] : memref<72x8xbf16, #tpu.memory_space<vmem>>, vector<8x8xbf16>
    %c64 = arith.constant 64 : index
    %c0_11 = arith.constant 0 : index
    %31 = vector.load %arg3[%c64, %c0_11] : memref<72x8xbf16, #tpu.memory_space<vmem>>, vector<8x8xbf16>
    %c0_12 = arith.constant 0 : index
    %c0_13 = arith.constant 0 : index
    %32 = vector.load %arg4[%c0_12, %c0_13] : memref<1x8xf32, #tpu.memory_space<vmem>>, vector<1x8xf32>
    %c0_14 = arith.constant 0 : index
    %c0_15 = arith.constant 0 : index
    %33 = vector.load %arg5[%c0_14, %c0_15] : memref<1x8xf32, #tpu.memory_space<vmem>>, vector<1x8xf32>
    %cst = arith.constant 0.000000e+00 : f32
    %34 = vector.broadcast %cst : f32 to vector<256x8xf32>
    %cst_16 = arith.constant dense<0.000000e+00> : vector<256x8xf32>
    %35 = tpu.matmul %6, %23, %cst_16 {dimension_numbers = #tpu.dot_dimension_numbers<[1], [0], [0], [1], [0, 0, 1, 1], [], []>} : vector<256x8xbf16>, vector<8x8xbf16>, vector<256x8xf32> -> vector<256x8xf32>
    %36 = arith.addf %34, %35 : vector<256x8xf32>
    %cst_17 = arith.constant dense<0.000000e+00> : vector<256x8xf32>
    %37 = tpu.matmul %8, %24, %cst_17 {dimension_numbers = #tpu.dot_dimension_numbers<[1], [0], [0], [1], [0, 0, 1, 1], [], []>} : vector<256x8xbf16>, vector<8x8xbf16>, vector<256x8xf32> -> vector<256x8xf32>
    %38 = arith.addf %36, %37 : vector<256x8xf32>
    %cst_18 = arith.constant dense<0.000000e+00> : vector<256x8xf32>
    %39 = tpu.matmul %10, %25, %cst_18 {dimension_numbers = #tpu.dot_dimension_numbers<[1], [0], [0], [1], [0, 0, 1, 1], [], []>} : vector<256x8xbf16>, vector<8x8xbf16>, vector<256x8xf32> -> vector<256x8xf32>
    %40 = arith.addf %38, %39 : vector<256x8xf32>
    %cst_19 = arith.constant dense<0.000000e+00> : vector<256x8xf32>
    %41 = tpu.matmul %12, %26, %cst_19 {dimension_numbers = #tpu.dot_dimension_numbers<[1], [0], [0], [1], [0, 0, 1, 1], [], []>} : vector<256x8xbf16>, vector<8x8xbf16>, vector<256x8xf32> -> vector<256x8xf32>
    %42 = arith.addf %40, %41 : vector<256x8xf32>
    %cst_20 = arith.constant dense<0.000000e+00> : vector<256x8xf32>
    %43 = tpu.matmul %14, %27, %cst_20 {dimension_numbers = #tpu.dot_dimension_numbers<[1], [0], [0], [1], [0, 0, 1, 1], [], []>} : vector<256x8xbf16>, vector<8x8xbf16>, vector<256x8xf32> -> vector<256x8xf32>
    %44 = arith.addf %42, %43 : vector<256x8xf32>
    %cst_21 = arith.constant dense<0.000000e+00> : vector<256x8xf32>
    %45 = tpu.matmul %16, %28, %cst_21 {dimension_numbers = #tpu.dot_dimension_numbers<[1], [0], [0], [1], [0, 0, 1, 1], [], []>} : vector<256x8xbf16>, vector<8x8xbf16>, vector<256x8xf32> -> vector<256x8xf32>
    %46 = arith.addf %44, %45 : vector<256x8xf32>
    %cst_22 = arith.constant dense<0.000000e+00> : vector<256x8xf32>
    %47 = tpu.matmul %18, %29, %cst_22 {dimension_numbers = #tpu.dot_dimension_numbers<[1], [0], [0], [1], [0, 0, 1, 1], [], []>} : vector<256x8xbf16>, vector<8x8xbf16>, vector<256x8xf32> -> vector<256x8xf32>
    %48 = arith.addf %46, %47 : vector<256x8xf32>
    %cst_23 = arith.constant dense<0.000000e+00> : vector<256x8xf32>
    %49 = tpu.matmul %20, %30, %cst_23 {dimension_numbers = #tpu.dot_dimension_numbers<[1], [0], [0], [1], [0, 0, 1, 1], [], []>} : vector<256x8xbf16>, vector<8x8xbf16>, vector<256x8xf32> -> vector<256x8xf32>
    %50 = arith.addf %48, %49 : vector<256x8xf32>
    %cst_24 = arith.constant dense<0.000000e+00> : vector<256x8xf32>
    %51 = tpu.matmul %22, %31, %cst_24 {dimension_numbers = #tpu.dot_dimension_numbers<[1], [0], [0], [1], [0, 0, 1, 1], [], []>} : vector<256x8xbf16>, vector<8x8xbf16>, vector<256x8xf32> -> vector<256x8xf32>
    %52 = arith.addf %50, %51 : vector<256x8xf32>
    %53 = vector.broadcast %32 : vector<1x8xf32> to vector<256x8xf32>
    %54 = arith.mulf %52, %53 : vector<256x8xf32>
    %55 = vector.broadcast %33 : vector<1x8xf32> to vector<256x8xf32>
    %56 = arith.addf %54, %55 : vector<256x8xf32>
    %cst_25 = arith.constant 0.000000e+00 : f32
    %57 = vector.broadcast %cst_25 : f32 to vector<256x8xf32>
    %58 = arith.maximumf %56, %57 : vector<256x8xf32>
    %c0_26 = arith.constant 0 : index
    %c0_27 = arith.constant 0 : index
    %c0_28 = arith.constant 0 : index
    %59 = vector.load %arg6[%c0_26, %c0_27, %c0_28] : memref<1x256x8xf32, #tpu.memory_space<vmem>>, vector<1x256x8xf32>
    %60 = vector.shape_cast %59 : vector<1x256x8xf32> to vector<256x8xf32>
    %61 = vector.shape_cast %58 : vector<256x8xf32> to vector<1x256x8xf32>
    tpu.vector_store %arg6[%c0_26, %c0_27, %c0_28], %61 {strides = array<i32>} : memref<1x256x8xf32, #tpu.memory_space<vmem>>, vector<1x256x8xf32>,
    return
  }
  func.func @transform_0(%arg0: i32, %arg1: i32) -> (i32, i32, i32, i32) {
    %c0_i32 = arith.constant 0 : i32
    %c0_i32_0 = arith.constant 0 : i32
    %c0_i32_1 = arith.constant 0 : i32
    %c0_i32_2 = arith.constant 0 : i32
    return %arg0, %c0_i32, %c0_i32_0, %c0_i32_1 : i32, i32, i32, i32
  }
  func.func @transform_1(%arg0: i32, %arg1: i32) -> (i32, i32) {
    %c0_i32 = arith.constant 0 : i32
    %c0_i32_0 = arith.constant 0 : i32
    %c0_i32_1 = arith.constant 0 : i32
    return %c0_i32, %c0_i32_0 : i32, i32
  }
  func.func @transform_2(%arg0: i32, %arg1: i32) -> (i32, i32) {
    %c0_i32 = arith.constant 0 : i32
    %c0_i32_0 = arith.constant 0 : i32
    %c0_i32_1 = arith.constant 0 : i32
    return %c0_i32, %c0_i32_0 : i32, i32
  }
  func.func @transform_3(%arg0: i32, %arg1: i32) -> (i32, i32) {
    %c0_i32 = arith.constant 0 : i32
    %c0_i32_0 = arith.constant 0 : i32
    %c0_i32_1 = arith.constant 0 : i32
    return %c0_i32, %c0_i32_0 : i32, i32
  }
  func.func @transform_4(%arg0: i32, %arg1: i32) -> (i32, i32, i32) {
    %c0_i32 = arith.constant 0 : i32
    %c0_i32_0 = arith.constant 0 : i32
    return %arg0, %arg1, %c0_i32 : i32, i32, i32
  }
}

</mosaic_0001>

<llo_original>
// kernel: up_forward.1
$region0: #{up_forward.1}
  #allocation0 [shape = 'u32[]', space=smem, size = 0x4, offset = 0x4, fixed_abs, tag = 'smem constant byte address 0x4 - core index']
  #allocation1 [shape = 'u32[144,128]{1,0:T(1,128)}', space=vmem, size = 0x12000, scoped, tag = 'internal scratch']
  %s0 = inlined_call_operand.vmem [shape: bf16[2,18,18,8], index: 0, kind: input, shape index: {}]
  %s1 = inlined_call_operand.vmem [shape: bf16[72,8], index: 1, kind: input, shape index: {}]
  %s2 = inlined_call_operand.vmem [shape: f32[1,8], index: 2, kind: input, shape index: {}]
  %s3 = inlined_call_operand.vmem [shape: f32[1,8], index: 3, kind: input, shape index: {}]
  %s4 = inlined_call_operand.vmem [shape: f32[2,256,8], index: 4, kind: output, shape index: {}]
  %s5 = sld [smem:[#allocation0]]
  $region49: #{up_forward.1} parent=0
    _
  %s7 = ssub.s32 1, %s5
  %s8 = scalar_select 0, %s7, %s5
  loop: start=0, step=1, limit=4
  $region2: #{up_forward.1} parent=0 // loop_pre_header
    _
  $region3: #{up_forward.1} parent=0 // loop_header
    %s10 = sphi 0, %s14
    %p11 = scmp.ge.s32.totalorder %s10, 4
    %s17 = sphi 0, %s29
    %s18 = sphi 0, %s25
    %s19 = sphi 0, %s17
    %s20 = sphi 0, %s18
    %s21 = sphi 0, %s19
    %s22 = sphi 0, %s20
    %s32 = sphi 0, %s34
    %s35 = sphi 0, %s32
    %s36 = sphi 0, %s35
    %s52 = sphi 0, %s36
    %s56 = sphi 0, %s56
    %s58 = sphi 0, %s56
    %s59 = sphi 0, %s58
    %s73 = sphi 0, %s59
    %s77 = sphi 0, %s77
    %s79 = sphi 0, %s77
    %s80 = sphi 0, %s79
    %s94 = sphi 0, %s80
    %s98 = sphi 0, %s98
    %s100 = sphi 0, %s98
    %s101 = sphi 0, %s100
    %s115 = sphi 0, %s101
    %s123 = sphi 0, %s125
    %s126 = sphi 0, %s123
    %s127 = sphi 0, %s126
    %s143 = sphi 0, %s127
  $region4: #{up_forward.1} parent=0 // loop_header_branch
    %13 = sbr.rel (%p11) target = $region8
  $region5: #{up_forward.1} parent=0 // loop_body
    %s15 = ssub.s32 %s10, 1
    %s16 = ssub.s32 %s10, 2
    %s23 = sadd.s32 1, %s18
    %p24 = scmp.ge.s32.totalorder %s23, 1
    %s25 = scalar_select %p24, 0, %s23
    %s26 = sadd.s32 1, %s17
    %s27 = scalar_select %p24, %s26, %s17
    %p28 = scmp.ge.s32.totalorder %s27, 2
    %s29 = scalar_select %p28, 0, %s27
    %s30 = ssub.s32 %s17, %s29
    %p31 = scmp.eq.s32.totalorder %s30, 0
    %s33 = sadd.s32 %s32, 1
    %s34 = scalar_select %p31, %s32, %s33
    %p37 = pneg %p31
    %p38 = scmp.eq.s32.totalorder %s10, 1
    %p39 = por %p37, %p38
    %p40 = scmp.ne.s32.totalorder %s32, %s35
    %p41 = scmp.eq.s32.totalorder %s10, 0
    %p42 = por %p40, %p41
    %p43 = scmp.ne.s32.totalorder %s32, %s35
    %p44 = scmp.eq.s32.totalorder %s15, 1
    %p45 = por %p43, %p44
    %p46 = scmp.ne.s32.totalorder %s35, %s36
    %p47 = scmp.eq.s32.totalorder %s15, 0
    %p48 = por %p46, %p47
    %p49 = scmp.ne.s32.totalorder %s35, %s36
    %p50 = scmp.eq.s32.totalorder %s16, 1
    %p51 = por %p49, %p50
    %p53 = scmp.ne.s32.totalorder %s36, %s52
    %p54 = scmp.eq.s32.totalorder %s16, 0
    %p55 = por %p53, %p54
    %s57 = sadd.s32 %s56, 1
    %p60 = scmp.eq.s32.totalorder %s10, 1
    %p61 = scmp.ne.s32.totalorder %s56, %s58
    %p62 = scmp.eq.s32.totalorder %s10, 0
    %p63 = por %p61, %p62
    %p64 = scmp.ne.s32.totalorder %s56, %s58
    %p65 = scmp.eq.s32.totalorder %s15, 1
    %p66 = por %p64, %p65
    %p67 = scmp.ne.s32.totalorder %s58, %s59
    %p68 = scmp.eq.s32.totalorder %s15, 0
    %p69 = por %p67, %p68
    %p70 = scmp.ne.s32.totalorder %s58, %s59
    %p71 = scmp.eq.s32.totalorder %s16, 1
    %p72 = por %p70, %p71
    %p74 = scmp.ne.s32.totalorder %s59, %s73
    %p75 = scmp.eq.s32.totalorder %s16, 0
    %p76 = por %p74, %p75
    %s78 = sadd.s32 %s77, 1
    %p81 = scmp.eq.s32.totalorder %s10, 1
    %p82 = scmp.ne.s32.totalorder %s77, %s79
    %p83 = scmp.eq.s32.totalorder %s10, 0
    %p84 = por %p82, %p83
    %p85 = scmp.ne.s32.totalorder %s77, %s79
    %p86 = scmp.eq.s32.totalorder %s15, 1
    %p87 = por %p85, %p86
    %p88 = scmp.ne.s32.totalorder %s79, %s80
    %p89 = scmp.eq.s32.totalorder %s15, 0
    %p90 = por %p88, %p89
    %p91 = scmp.ne.s32.totalorder %s79, %s80
    %p92 = scmp.eq.s32.totalorder %s16, 1
    %p93 = por %p91, %p92
    %p95 = scmp.ne.s32.totalorder %s80, %s94
    %p96 = scmp.eq.s32.totalorder %s16, 0
    %p97 = por %p95, %p96
    %s99 = sadd.s32 %s98, 1
    %p102 = scmp.eq.s32.totalorder %s10, 1
    %p103 = scmp.ne.s32.totalorder %s98, %s100
    %p104 = scmp.eq.s32.totalorder %s10, 0
    %p105 = por %p103, %p104
    %p106 = scmp.ne.s32.totalorder %s98, %s100
    %p107 = scmp.eq.s32.totalorder %s15, 1
    %p108 = por %p106, %p107
    %p109 = scmp.ne.s32.totalorder %s100, %s101
    %p110 = scmp.eq.s32.totalorder %s15, 0
    %p111 = por %p109, %p110
    %p112 = scmp.ne.s32.totalorder %s100, %s101
    %p113 = scmp.eq.s32.totalorder %s16, 1
    %p114 = por %p112, %p113
    %p116 = scmp.ne.s32.totalorder %s101, %s115
    %p117 = scmp.eq.s32.totalorder %s16, 0
    %p118 = por %p116, %p117
    %s119 = ssub.s32 %s17, %s29
    %s120 = ssub.s32 %s18, %s25
    %s121 = sor.u32 %s119, %s120
    %p122 = scmp.eq.s32.totalorder %s121, 0
    %s124 = sadd.s32 %s123, 1
    %s125 = scalar_select %p122, %s123, %s124
    %p128 = pneg %p122
    %p129 = scmp.eq.s32.totalorder %s10, 1
    %p130 = por %p128, %p129
    %p131 = scmp.ne.s32.totalorder %s123, %s126
    %p132 = scmp.eq.s32.totalorder %s10, 0
    %p133 = por %p131, %p132
    %p134 = scmp.ne.s32.totalorder %s123, %s126
    %p135 = scmp.eq.s32.totalorder %s15, 1
    %p136 = por %p134, %p135
    %p137 = scmp.ne.s32.totalorder %s126, %s127
    %p138 = scmp.eq.s32.totalorder %s15, 0
    %p139 = por %p137, %p138
    %p140 = scmp.ne.s32.totalorder %s126, %s127
    %p141 = scmp.eq.s32.totalorder %s16, 1
    %p142 = por %p140, %p141
    %p144 = scmp.ne.s32.totalorder %s127, %s143
    %p145 = scmp.eq.s32.totalorder %s16, 0
    %p146 = por %p144, %p145
    %p147 = scmp.le.s32.totalorder 1, %s10
    %p148 = scmp.lt.s32.totalorder %s10, 3
    %p149 = pnand %p147, %p148
    %p150 = pneg %p149
    // Predicated region
    $region9: #{up_forward.1} parent=5 // pred_check
      _
    $region10: #{up_forward.1} parent=5 // pred_check_branch
      %152 = sbr.rel (%p149) target = $region12
    $region11: #{up_forward.1} parent=5 // pred_region
      %s153 = ssub.s32 %s10, 1
      // Predicated region
      $region13: #{up_forward.1} parent=11 // pred_check
        %p154 = pneg %p69
      $region14: #{up_forward.1} parent=11 // pred_check_branch
        %156 = sbr.rel (%p154) target = $region16
      $region15: #{up_forward.1} parent=11 // pred_region
        _
      $region16: #{up_forward.1} parent=11 // pred_fallthru
        _
      // Predicated region
      $region17: #{up_forward.1} parent=11 // pred_check
        %p157 = pneg %p90
      $region18: #{up_forward.1} parent=11 // pred_check_branch
        %159 = sbr.rel (%p157) target = $region20
      $region19: #{up_forward.1} parent=11 // pred_region
        _
      $region20: #{up_forward.1} parent=11 // pred_fallthru
        _
      // Predicated region
      $region21: #{up_forward.1} parent=11 // pred_check
        %p160 = pneg %p111
      $region22: #{up_forward.1} parent=11 // pred_check_branch
        %162 = sbr.rel (%p160) target = $region24
      $region23: #{up_forward.1} parent=11 // pred_region
        _
      $region24: #{up_forward.1} parent=11 // pred_fallthru
        _
    $region12: #{up_forward.1} parent=5 // pred_fallthru
      _
    %p163 = scmp.lt.s32.totalorder %s10, 2
    // Predicated region
    $region25: #{up_forward.1} parent=5 // pred_check
      %p164 = pneg %p163
    $region26: #{up_forward.1} parent=5 // pred_check_branch
      %166 = sbr.rel (%p164) target = $region28
    $region27: #{up_forward.1} parent=5 // pred_region
      // Predicated region
      $region29: #{up_forward.1} parent=27 // pred_check
        %p167 = pneg %p42
      $region30: #{up_forward.1} parent=27 // pred_check_branch
        %169 = sbr.rel (%p167) target = $region32
      $region31: #{up_forward.1} parent=27 // pred_region
        %p170 = scmp.lt.s32.totalorder %s17, 1
        %s171 = scalar_select %p170, %s17, 1
        %s172 = smul.addr %s171, 54
        %s173 = smul.addr %s172, 4
        %s174 = scalar_lea.vmem %s0, %s173
      $region32: #{up_forward.1} parent=27 // pred_fallthru
        _
    $region28: #{up_forward.1} parent=5 // pred_fallthru
      _
    %p175 = scmp.le.s32.totalorder 1, %s10
    %p176 = scmp.lt.s32.totalorder %s10, 3
    %p177 = pnand %p175, %p176
    %p178 = pneg %p177
    // Predicated region
    $region33: #{up_forward.1} parent=5 // pred_check
      _
    $region34: #{up_forward.1} parent=5 // pred_check_branch
      %180 = sbr.rel (%p177) target = $region36
    $region35: #{up_forward.1} parent=5 // pred_region
      %s181 = ssub.s32 %s10, 1
      %p182 = scmp.lt.s32.totalorder %s19, 1
      %s183 = scalar_select %p182, %s19, 1
      %s184 = smul.addr %s183, 54
      %s185 = smul.addr %s184, 4
      %s186 = scalar_lea.vmem %s0, %s185
      %p187 = pneg %p48
      %p188 = pneg %p45
      %p189 = pneg %p69
      %p190 = pneg %p66
      %p191 = pneg %p90
      %p192 = pneg %p87
      %p193 = pneg %p111
      %p194 = pneg %p108
      %p195 = pneg %p139
      %p196 = pneg %p136
      %s197 = smul.u32 32, %s20
      %p198 = scmp.lt.s32.totalorder %s19, 1
      %s199 = scalar_select %p198, %s19, 1
      %p200 = scmp.lt.s32.totalorder %s197, 31
      %s201 = scalar_select %p200, %s197, 31
      %s202 = smul.addr %s199, 32
      %s203 = sadd.s32 %s201, %s202
      %s204 = smul.addr %s203, 8
      %s205 = scalar_lea.vmem %s4, %s204
      %p206 = scmp.lt.s32.totalorder %s19, 1
      %s207 = scalar_select %p206, %s19, 1
      %s208 = smul.addr %s207, 54
      %s209 = smul.addr %s208, 4
      %s210 = scalar_lea.vmem %s0, %s209
      %s211 = smul.u32 32, %s20
      %p212 = scmp.lt.s32.totalorder %s19, 1
      %s213 = scalar_select %p212, %s19, 1
      %p214 = scmp.lt.s32.totalorder %s211, 31
      %s215 = scalar_select %p214, %s211, 31
      %s216 = smul.addr %s213, 32
      %s217 = sadd.s32 %s215, %s216
      %s218 = smul.addr %s217, 8
      %s219 = scalar_lea.vmem %s4, %s218
      %s220 = smul.u32 32, %s20
      %s222 = smul.u32 %s20, 16
      %s223 = smul.u32 %s222, 3
      %s224 = smul.addr %s223, 4
      %s225 = scalar_lea.vmem %s210, %s224
      %v226 = vld [vmem:[%s225] sm:$0xf]
      %v227 = vld [vmem:[%s225 + $0x4] sm:$0xf]
      %v228 = vld [vmem:[%s225 + $0x8] sm:$0x1]
      %v229 = vld [vmem:[%s225 + $0xc] sm:$0xf]
      %v230 = vld [vmem:[%s225 + $0x10] sm:$0xf]
      %v231 = vld [vmem:[%s225 + $0x14] sm:$0x1]
      %v232 = vld [vmem:[%s225 + $0x18] sm:$0xf]
      %v233 = vld [vmem:[%s225 + $0x1c] sm:$0xf]
      %v234 = vld [vmem:[%s225 + $0x20] sm:$0x1]
      %v235 = vld [vmem:[%s225 + $0x24] sm:$0xf]
      %v236 = vld [vmem:[%s225 + $0x28] sm:$0xf]
      %v237 = vld [vmem:[%s225 + $0x2c] sm:$0x1]
      %v238 = vld [vmem:[%s225 + $0x30] sm:$0xf]
      %v239 = vld [vmem:[%s225 + $0x34] sm:$0xf]
      %v240 = vld [vmem:[%s225 + $0x38] sm:$0x1]
      %v241 = vld [vmem:[%s225 + $0x3c] sm:$0xf]
      %v242 = vld [vmem:[%s225 + $0x40] sm:$0xf]
      %v243 = vld [vmem:[%s225 + $0x44] sm:$0x1]
      %v244 = vld [vmem:[%s225 + $0x48] sm:$0xf]
      %v245 = vld [vmem:[%s225 + $0x4c] sm:$0xf]
      %v246 = vld [vmem:[%s225 + $0x50] sm:$0x1]
      %v247 = vld [vmem:[%s225 + $0x54] sm:$0xf]
      %v248 = vld [vmem:[%s225 + $0x58] sm:$0xf]
      %v249 = vld [vmem:[%s225 + $0x5c] sm:$0x1]
      %v250 = vld [vmem:[%s225 + $0x60] sm:$0xf]
      %v251 = vld [vmem:[%s225 + $0x64] sm:$0xf]
      %v252 = vld [vmem:[%s225 + $0x68] sm:$0x1]
      %v253 = vld [vmem:[%s225 + $0x6c] sm:$0xf]
      %v254 = vld [vmem:[%s225 + $0x70] sm:$0xf]
      %v255 = vld [vmem:[%s225 + $0x74] sm:$0x1]
      %v256 = vld [vmem:[%s225 + $0x78] sm:$0xf]
      %v257 = vld [vmem:[%s225 + $0x7c] sm:$0xf]
      %v258 = vld [vmem:[%s225 + $0x80] sm:$0x1]
      %v259 = vld [vmem:[%s225 + $0x84] sm:$0xf]
      %v260 = vld [vmem:[%s225 + $0x88] sm:$0xf]
      %v261 = vld [vmem:[%s225 + $0x8c] sm:$0x1]
      %v262 = vld [vmem:[%s225 + $0x90] sm:$0xf]
      %v263 = vld [vmem:[%s225 + $0x94] sm:$0xf]
      %v264 = vld [vmem:[%s225 + $0x98] sm:$0x1]
      %v265 = vld [vmem:[%s225 + $0x9c] sm:$0xf]
      %v266 = vld [vmem:[%s225 + $0xa0] sm:$0xf]
      %v267 = vld [vmem:[%s225 + $0xa4] sm:$0x1]
      %v268 = vld [vmem:[%s225 + $0xa8] sm:$0xf]
      %v269 = vld [vmem:[%s225 + $0xac] sm:$0xf]
      %v270 = vld [vmem:[%s225 + $0xb0] sm:$0x1]
      %v271 = vld [vmem:[%s225 + $0xb4] sm:$0xf]
      %v272 = vld [vmem:[%s225 + $0xb8] sm:$0xf]
      %v273 = vld [vmem:[%s225 + $0xbc] sm:$0x1]
      %v274 = vld [vmem:[%s225 + $0xc0] sm:$0xf]
      %v275 = vld [vmem:[%s225 + $0xc4] sm:$0xf]
      %v276 = vld [vmem:[%s225 + $0xc8] sm:$0x1]
      %v277 = vld [vmem:[%s225 + $0xcc] sm:$0xf]
      %v278 = vld [vmem:[%s225 + $0xd0] sm:$0xf]
      %v279 = vld [vmem:[%s225 + $0xd4] sm:$0x1]
      %vm280 = vsmask.f32 3328
      %vm281 = vsmask.f32 7440
      %vm282 = vmor %vm280, %vm281
      %v284 = vshrl.u32 %v226, 16
      %v286 = vrot.slane %v284, 4
      %v287 = vshll.u32 %v226, 16
      %v289 = vrot.slane %v287, 5
      %v290 = vor.u32 %v286, %v289
      %v291 = vrot.slane %v290, 4
      %v293 = vshll.u32 %v227, 16
      %v295 = vrot.slane %v293, 5
      %v296 = vsel %vm282, %v291, %v295
      %v297 = vshrl.u32 %v227, 16
      %v299 = vrot.slane %v297, 4
      %v300 = vor.u32 %v299, %v295
      %v301 = vrot.slane %v300, 4
      %v303 = vshll.u32 %v228, 16
      %v305 = vrot.slane %v303, 5
      %v306 = vsel %vm282, %v301, %v305
      %v308 = vshrl.u32 %v229, 16
      %v310 = vrot.slane %v308, 4
      %v311 = vshll.u32 %v229, 16
      %v313 = vrot.slane %v311, 5
      %v314 = vor.u32 %v310, %v313
      %v315 = vrot.slane %v314, 4
      %v317 = vshll.u32 %v230, 16
      %v319 = vrot.slane %v317, 5
      %v320 = vsel %vm282, %v315, %v319
      %v321 = vshrl.u32 %v230, 16
      %v323 = vrot.slane %v321, 4
      %v324 = vor.u32 %v323, %v319
      %v325 = vrot.slane %v324, 4
      %v327 = vshll.u32 %v231, 16
      %v329 = vrot.slane %v327, 5
      %v330 = vsel %vm282, %v325, %v329
      %v332 = vshrl.u32 %v232, 16
      %v334 = vrot.slane %v332, 4
      %v335 = vshll.u32 %v232, 16
      %v337 = vrot.slane %v335, 5
      %v338 = vor.u32 %v334, %v337
      %v339 = vrot.slane %v338, 4
      %v341 = vshll.u32 %v233, 16
      %v343 = vrot.slane %v341, 5
      %v344 = vsel %vm282, %v339, %v343
      %v345 = vshrl.u32 %v233, 16
      %v347 = vrot.slane %v345, 4
      %v348 = vor.u32 %v347, %v343
      %v349 = vrot.slane %v348, 4
      %v351 = vshll.u32 %v234, 16
      %v353 = vrot.slane %v351, 5
      %v354 = vsel %vm282, %v349, %v353
      %v356 = vshrl.u32 %v235, 16
      %v358 = vrot.slane %v356, 4
      %v359 = vshll.u32 %v235, 16
      %v361 = vrot.slane %v359, 5
      %v362 = vor.u32 %v358, %v361
      %v363 = vrot.slane %v362, 4
      %v365 = vshll.u32 %v236, 16
      %v367 = vrot.slane %v365, 5
      %v368 = vsel %vm282, %v363, %v367
      %v369 = vshrl.u32 %v236, 16
      %v371 = vrot.slane %v369, 4
      %v372 = vor.u32 %v371, %v367
      %v373 = vrot.slane %v372, 4
      %v375 = vshll.u32 %v237, 16
      %v377 = vrot.slane %v375, 5
      %v378 = vsel %vm282, %v373, %v377
      %v380 = vshrl.u32 %v238, 16
      %v382 = vrot.slane %v380, 4
      %v383 = vshll.u32 %v238, 16
      %v385 = vrot.slane %v383, 5
      %v386 = vor.u32 %v382, %v385
      %v387 = vrot.slane %v386, 4
      %v389 = vshll.u32 %v239, 16
      %v391 = vrot.slane %v389, 5
      %v392 = vsel %vm282, %v387, %v391
      %v393 = vshrl.u32 %v239, 16
      %v395 = vrot.slane %v393, 4
      %v396 = vor.u32 %v395, %v391
      %v397 = vrot.slane %v396, 4
      %v399 = vshll.u32 %v240, 16
      %v401 = vrot.slane %v399, 5
      %v402 = vsel %vm282, %v397, %v401
      %v404 = vshrl.u32 %v241, 16
      %v406 = vrot.slane %v404, 4
      %v407 = vshll.u32 %v241, 16
      %v409 = vrot.slane %v407, 5
      %v410 = vor.u32 %v406, %v409
      %v411 = vrot.slane %v410, 4
      %v413 = vshll.u32 %v242, 16
      %v415 = vrot.slane %v413, 5
      %v416 = vsel %vm282, %v411, %v415
      %v417 = vshrl.u32 %v242, 16
      %v419 = vrot.slane %v417, 4
      %v420 = vor.u32 %v419, %v415
      %v421 = vrot.slane %v420, 4
      %v423 = vshll.u32 %v243, 16
      %v425 = vrot.slane %v423, 5
      %v426 = vsel %vm282, %v421, %v425
      %v428 = vshrl.u32 %v244, 16
      %v430 = vrot.slane %v428, 4
      %v431 = vshll.u32 %v244, 16
      %v433 = vrot.slane %v431, 5
      %v434 = vor.u32 %v430, %v433
      %v435 = vrot.slane %v434, 4
      %v437 = vshll.u32 %v245, 16
      %v439 = vrot.slane %v437, 5
      %v440 = vsel %vm282, %v435, %v439
      %v441 = vshrl.u32 %v245, 16
      %v443 = vrot.slane %v441, 4
      %v444 = vor.u32 %v443, %v439
      %v445 = vrot.slane %v444, 4
      %v447 = vshll.u32 %v246, 16
      %v449 = vrot.slane %v447, 5
      %v450 = vsel %vm282, %v445, %v449
      %v452 = vshrl.u32 %v247, 16
      %v454 = vrot.slane %v452, 4
      %v455 = vshll.u32 %v247, 16
      %v457 = vrot.slane %v455, 5
      %v458 = vor.u32 %v454, %v457
      %v459 = vrot.slane %v458, 4
      %v461 = vshll.u32 %v248, 16
      %v463 = vrot.slane %v461, 5
      %v464 = vsel %vm282, %v459, %v463
      %v465 = vshrl.u32 %v248, 16
      %v467 = vrot.slane %v465, 4
      %v468 = vor.u32 %v467, %v463
      %v469 = vrot.slane %v468, 4
      %v471 = vshll.u32 %v249, 16
      %v473 = vrot.slane %v471, 5
      %v474 = vsel %vm282, %v469, %v473
      %v476 = vshrl.u32 %v250, 16
      %v478 = vrot.slane %v476, 4
      %v479 = vshll.u32 %v250, 16
      %v481 = vrot.slane %v479, 5
      %v482 = vor.u32 %v478, %v481
      %v483 = vrot.slane %v482, 4
      %v485 = vshll.u32 %v251, 16
      %v487 = vrot.slane %v485, 5
      %v488 = vsel %vm282, %v483, %v487
      %v489 = vshrl.u32 %v251, 16
      %v491 = vrot.slane %v489, 4
      %v492 = vor.u32 %v491, %v487
      %v493 = vrot.slane %v492, 4
      %v495 = vshll.u32 %v252, 16
      %v497 = vrot.slane %v495, 5
      %v498 = vsel %vm282, %v493, %v497
      %v500 = vshrl.u32 %v253, 16
      %v502 = vrot.slane %v500, 4
      %v503 = vshll.u32 %v253, 16
      %v505 = vrot.slane %v503, 5
      %v506 = vor.u32 %v502, %v505
      %v507 = vrot.slane %v506, 4
      %v509 = vshll.u32 %v254, 16
      %v511 = vrot.slane %v509, 5
      %v512 = vsel %vm282, %v507, %v511
      %v513 = vshrl.u32 %v254, 16
      %v515 = vrot.slane %v513, 4
      %v516 = vor.u32 %v515, %v511
      %v517 = vrot.slane %v516, 4
      %v519 = vshll.u32 %v255, 16
      %v521 = vrot.slane %v519, 5
      %v522 = vsel %vm282, %v517, %v521
      %v524 = vshrl.u32 %v256, 16
      %v526 = vrot.slane %v524, 4
      %v527 = vshll.u32 %v256, 16
      %v529 = vrot.slane %v527, 5
      %v530 = vor.u32 %v526, %v529
      %v531 = vrot.slane %v530, 4
      %v533 = vshll.u32 %v257, 16
      %v535 = vrot.slane %v533, 5
      %v536 = vsel %vm282, %v531, %v535
      %v537 = vshrl.u32 %v257, 16
      %v539 = vrot.slane %v537, 4
      %v540 = vor.u32 %v539, %v535
      %v541 = vrot.slane %v540, 4
      %v543 = vshll.u32 %v258, 16
      %v545 = vrot.slane %v543, 5
      %v546 = vsel %vm282, %v541, %v545
      %v548 = vshrl.u32 %v259, 16
      %v550 = vrot.slane %v548, 4
      %v551 = vshll.u32 %v259, 16
      %v553 = vrot.slane %v551, 5
      %v554 = vor.u32 %v550, %v553
      %v555 = vrot.slane %v554, 4
      %v557 = vshll.u32 %v260, 16
      %v559 = vrot.slane %v557, 5
      %v560 = vsel %vm282, %v555, %v559
      %v561 = vshrl.u32 %v260, 16
      %v563 = vrot.slane %v561, 4
      %v564 = vor.u32 %v563, %v559
      %v565 = vrot.slane %v564, 4
      %v567 = vshll.u32 %v261, 16
      %v569 = vrot.slane %v567, 5
      %v570 = vsel %vm282, %v565, %v569
      %v572 = vshrl.u32 %v262, 16
      %v574 = vrot.slane %v572, 4
      %v575 = vshll.u32 %v262, 16
      %v577 = vrot.slane %v575, 5
      %v578 = vor.u32 %v574, %v577
      %v579 = vrot.slane %v578, 4
      %v581 = vshll.u32 %v263, 16
      %v583 = vrot.slane %v581, 5
      %v584 = vsel %vm282, %v579, %v583
      %v585 = vshrl.u32 %v263, 16
      %v587 = vrot.slane %v585, 4
      %v588 = vor.u32 %v587, %v583
      %v589 = vrot.slane %v588, 4
      %v591 = vshll.u32 %v264, 16
      %v593 = vrot.slane %v591, 5
      %v594 = vsel %vm282, %v589, %v593
      %v596 = vshrl.u32 %v265, 16
      %v598 = vrot.slane %v596, 4
      %v599 = vshll.u32 %v265, 16
      %v601 = vrot.slane %v599, 5
      %v602 = vor.u32 %v598, %v601
      %v603 = vrot.slane %v602, 4
      %v605 = vshll.u32 %v266, 16
      %v607 = vrot.slane %v605, 5
      %v608 = vsel %vm282, %v603, %v607
      %v609 = vshrl.u32 %v266, 16
      %v611 = vrot.slane %v609, 4
      %v612 = vor.u32 %v611, %v607
      %v613 = vrot.slane %v612, 4
      %v615 = vshll.u32 %v267, 16
      %v617 = vrot.slane %v615, 5
      %v618 = vsel %vm282, %v613, %v617
      %v620 = vshrl.u32 %v268, 16
      %v622 = vrot.slane %v620, 4
      %v623 = vshll.u32 %v268, 16
      %v625 = vrot.slane %v623, 5
      %v626 = vor.u32 %v622, %v625
      %v627 = vrot.slane %v626, 4
      %v629 = vshll.u32 %v269, 16
      %v631 = vrot.slane %v629, 5
      %v632 = vsel %vm282, %v627, %v631
      %v633 = vshrl.u32 %v269, 16
      %v635 = vrot.slane %v633, 4
      %v636 = vor.u32 %v635, %v631
      %v637 = vrot.slane %v636, 4
      %v639 = vshll.u32 %v270, 16
      %v641 = vrot.slane %v639, 5
      %v642 = vsel %vm282, %v637, %v641
      %v644 = vshrl.u32 %v271, 16
      %v646 = vrot.slane %v644, 4
      %v647 = vshll.u32 %v271, 16
      %v649 = vrot.slane %v647, 5
      %v650 = vor.u32 %v646, %v649
      %v651 = vrot.slane %v650, 4
      %v653 = vshll.u32 %v272, 16
      %v655 = vrot.slane %v653, 5
      %v656 = vsel %vm282, %v651, %v655
      %v657 = vshrl.u32 %v272, 16
      %v659 = vrot.slane %v657, 4
      %v660 = vor.u32 %v659, %v655
      %v661 = vrot.slane %v660, 4
      %v663 = vshll.u32 %v273, 16
      %v665 = vrot.slane %v663, 5
      %v666 = vsel %vm282, %v661, %v665
      %vm715 = vcmask 1042432
      %vm716 = vcmask 1046532
      %vm717 = vmor %vm715, %vm716
      %v718 = vrot.slane %v226, 5
      %v719 = vrot.slane %v718, 4
      %v720 = vrot.slane %v227, 5
      %v721 = vsel %vm717, %v719, %v720
      %v722 = vrot.slane %v720, 4
      %v723 = vrot.slane %v228, 5
      %v724 = vsel %vm717, %v722, %v723
      %v725 = vrot.slane %v229, 5
      %v726 = vrot.slane %v725, 4
      %v727 = vrot.slane %v230, 5
      %v728 = vsel %vm717, %v726, %v727
      %v729 = vrot.slane %v727, 4
      %v730 = vrot.slane %v231, 5
      %v731 = vsel %vm717, %v729, %v730
      %v732 = vrot.slane %v232, 5
      %v733 = vrot.slane %v732, 4
      %v734 = vrot.slane %v233, 5
      %v735 = vsel %vm717, %v733, %v734
      %v736 = vrot.slane %v734, 4
      %v737 = vrot.slane %v234, 5
      %v738 = vsel %vm717, %v736, %v737
      %v739 = vrot.slane %v235, 5
      %v740 = vrot.slane %v739, 4
      %v741 = vrot.slane %v236, 5
      %v742 = vsel %vm717, %v740, %v741
      %v743 = vrot.slane %v741, 4
      %v744 = vrot.slane %v237, 5
      %v745 = vsel %vm717, %v743, %v744
      %v746 = vrot.slane %v238, 5
      %v747 = vrot.slane %v746, 4
      %v748 = vrot.slane %v239, 5
      %v749 = vsel %vm717, %v747, %v748
      %v750 = vrot.slane %v748, 4
      %v751 = vrot.slane %v240, 5
      %v752 = vsel %vm717, %v750, %v751
      %v753 = vrot.slane %v241, 5
      %v754 = vrot.slane %v753, 4
      %v755 = vrot.slane %v242, 5
      %v756 = vsel %vm717, %v754, %v755
      %v757 = vrot.slane %v755, 4
      %v758 = vrot.slane %v243, 5
      %v759 = vsel %vm717, %v757, %v758
      %v760 = vrot.slane %v244, 5
      %v761 = vrot.slane %v760, 4
      %v762 = vrot.slane %v245, 5
      %v763 = vsel %vm717, %v761, %v762
      %v764 = vrot.slane %v762, 4
      %v765 = vrot.slane %v246, 5
      %v766 = vsel %vm717, %v764, %v765
      %v767 = vrot.slane %v247, 5
      %v768 = vrot.slane %v767, 4
      %v769 = vrot.slane %v248, 5
      %v770 = vsel %vm717, %v768, %v769
      %v771 = vrot.slane %v769, 4
      %v772 = vrot.slane %v249, 5
      %v773 = vsel %vm717, %v771, %v772
      %v774 = vrot.slane %v250, 5
      %v775 = vrot.slane %v774, 4
      %v776 = vrot.slane %v251, 5
      %v777 = vsel %vm717, %v775, %v776
      %v778 = vrot.slane %v776, 4
      %v779 = vrot.slane %v252, 5
      %v780 = vsel %vm717, %v778, %v779
      %v781 = vrot.slane %v253, 5
      %v782 = vrot.slane %v781, 4
      %v783 = vrot.slane %v254, 5
      %v784 = vsel %vm717, %v782, %v783
      %v785 = vrot.slane %v783, 4
      %v786 = vrot.slane %v255, 5
      %v787 = vsel %vm717, %v785, %v786
      %v788 = vrot.slane %v256, 5
      %v789 = vrot.slane %v788, 4
      %v790 = vrot.slane %v257, 5
      %v791 = vsel %vm717, %v789, %v790
      %v792 = vrot.slane %v790, 4
      %v793 = vrot.slane %v258, 5
      %v794 = vsel %vm717, %v792, %v793
      %v795 = vrot.slane %v259, 5
      %v796 = vrot.slane %v795, 4
      %v797 = vrot.slane %v260, 5
      %v798 = vsel %vm717, %v796, %v797
      %v799 = vrot.slane %v797, 4
      %v800 = vrot.slane %v261, 5
      %v801 = vsel %vm717, %v799, %v800
      %v802 = vrot.slane %v262, 5
      %v803 = vrot.slane %v802, 4
      %v804 = vrot.slane %v263, 5
      %v805 = vsel %vm717, %v803, %v804
      %v806 = vrot.slane %v804, 4
      %v807 = vrot.slane %v264, 5
      %v808 = vsel %vm717, %v806, %v807
      %v809 = vrot.slane %v265, 5
      %v810 = vrot.slane %v809, 4
      %v811 = vrot.slane %v266, 5
      %v812 = vsel %vm717, %v810, %v811
      %v813 = vrot.slane %v811, 4
      %v814 = vrot.slane %v267, 5
      %v815 = vsel %vm717, %v813, %v814
      %v816 = vrot.slane %v268, 5
      %v817 = vrot.slane %v816, 4
      %v818 = vrot.slane %v269, 5
      %v819 = vsel %vm717, %v817, %v818
      %v820 = vrot.slane %v818, 4
      %v821 = vrot.slane %v270, 5
      %v822 = vsel %vm717, %v820, %v821
      %v823 = vrot.slane %v271, 5
      %v824 = vrot.slane %v823, 4
      %v825 = vrot.slane %v272, 5
      %v826 = vsel %vm717, %v824, %v825
      %v827 = vrot.slane %v825, 4
      %v828 = vrot.slane %v273, 5
      %v829 = vsel %vm717, %v827, %v828
      %v831 = vshrl.u32 %v274, 16
      %v833 = vrot.slane %v831, 4
      %v834 = vshll.u32 %v274, 16
      %v836 = vrot.slane %v834, 5
      %v837 = vor.u32 %v833, %v836
      %v838 = vrot.slane %v837, 4
      %v840 = vshll.u32 %v275, 16
      %v842 = vrot.slane %v840, 5
      %v843 = vsel %vm282, %v838, %v842
      %v844 = vshrl.u32 %v275, 16
      %v846 = vrot.slane %v844, 4
      %v847 = vor.u32 %v846, %v842
      %v848 = vrot.slane %v847, 4
      %v850 = vshll.u32 %v276, 16
      %v852 = vrot.slane %v850, 5
      %v853 = vsel %vm282, %v848, %v852
      %v857 = vrot.slane %v274, 5
      %v858 = vrot.slane %v857, 4
      %v859 = vrot.slane %v275, 5
      %v860 = vsel %vm717, %v858, %v859
      %v861 = vrot.slane %v859, 4
      %v862 = vrot.slane %v276, 5
      %v863 = vsel %vm717, %v861, %v862
      %v865 = vshrl.u32 %v277, 16
      %v867 = vrot.slane %v865, 4
      %v868 = vshll.u32 %v277, 16
      %v870 = vrot.slane %v868, 5
      %v871 = vor.u32 %v867, %v870
      %v872 = vrot.slane %v871, 4
      %v874 = vshll.u32 %v278, 16
      %v876 = vrot.slane %v874, 5
      %v877 = vsel %vm282, %v872, %v876
      %v878 = vshrl.u32 %v278, 16
      %v880 = vrot.slane %v878, 4
      %v881 = vor.u32 %v880, %v876
      %v882 = vrot.slane %v881, 4
      %v884 = vshll.u32 %v279, 16
      %v886 = vrot.slane %v884, 5
      %v887 = vsel %vm282, %v882, %v886
      %v891 = vrot.slane %v277, 5
      %v892 = vrot.slane %v891, 4
      %v893 = vrot.slane %v278, 5
      %v894 = vsel %vm717, %v892, %v893
      %v895 = vrot.slane %v893, 4
      %v896 = vrot.slane %v279, 5
      %v897 = vsel %vm717, %v895, %v896
      %v898 = vld [vmem:[%s1] sm:$0xf]
      %v899 = vld [vmem:[%s1 + $0x4] sm:$0xf]
      %v900 = vld [vmem:[%s1 + $0x8] sm:$0xf]
      %v901 = vld [vmem:[%s1 + $0xc] sm:$0xf]
      %v902 = vld [vmem:[%s1 + $0x10] sm:$0xf]
      %v903 = vld [vmem:[%s1 + $0x14] sm:$0xf]
      %v904 = vld [vmem:[%s1 + $0x18] sm:$0xf]
      %v905 = vld [vmem:[%s1 + $0x1c] sm:$0xf]
      %v906 = vld [vmem:[%s1 + $0x20] sm:$0xf]
      %v907 = vld [vmem:[%s2] sm:$0x1]
      %v908 = vld [vmem:[%s3] sm:$0x1]
      %v909 = vunpack.c.l.b16 %v296
      %v910 = vunpack.c.l.b16 %v306
      %v911 = vunpack.c.l.b16 %v320
      %v912 = vunpack.c.l.b16 %v330
      %v913 = vunpack.c.l.b16 %v344
      %v914 = vunpack.c.l.b16 %v354
      %v915 = vunpack.c.l.b16 %v368
      %v916 = vunpack.c.l.b16 %v378
      %v917 = vunpack.c.l.b16 %v392
      %v918 = vunpack.c.l.b16 %v402
      %v919 = vunpack.c.l.b16 %v416
      %v920 = vunpack.c.l.b16 %v426
      %v921 = vunpack.c.l.b16 %v440
      %v922 = vunpack.c.l.b16 %v450
      %v923 = vunpack.c.l.b16 %v464
      %v924 = vunpack.c.l.b16 %v474
      %v925 = vunpack.c.l.b16 %v488
      %v926 = vunpack.c.l.b16 %v498
      %v927 = vunpack.c.l.b16 %v512
      %v928 = vunpack.c.l.b16 %v522
      %v929 = vunpack.c.l.b16 %v536
      %v930 = vunpack.c.l.b16 %v546
      %v931 = vunpack.c.l.b16 %v560
      %v932 = vunpack.c.l.b16 %v570
      %v933 = vunpack.c.l.b16 %v584
      %v934 = vunpack.c.l.b16 %v594
      %v935 = vunpack.c.l.b16 %v608
      %v936 = vunpack.c.l.b16 %v618
      %v937 = vunpack.c.l.b16 %v632
      %v938 = vunpack.c.l.b16 %v642
      %v939 = vunpack.c.l.b16 %v656
      %v940 = vunpack.c.l.b16 %v666
      %v941 = vpack.c.b16 %v910, %v909
      %v942 = vpack.c.b16 %v912, %v911
      %v943 = vpack.c.b16 %v914, %v913
      %v944 = vpack.c.b16 %v916, %v915
      %v945 = vpack.c.b16 %v918, %v917
      %v946 = vpack.c.b16 %v920, %v919
      %v947 = vpack.c.b16 %v922, %v921
      %v948 = vpack.c.b16 %v924, %v923
      %v949 = vpack.c.b16 %v926, %v925
      %v950 = vpack.c.b16 %v928, %v927
      %v951 = vpack.c.b16 %v930, %v929
      %v952 = vpack.c.b16 %v932, %v931
      %v953 = vpack.c.b16 %v934, %v933
      %v954 = vpack.c.b16 %v936, %v935
      %v955 = vpack.c.b16 %v938, %v937
      %v956 = vpack.c.b16 %v940, %v939
      %vm957 = vcmask 64512
      %v959 = vsel %vm957, %v941, 0
      %v962 = vsel %vm957, %v942, 0
      %v965 = vsel %vm957, %v943, 0
      %v968 = vsel %vm957, %v944, 0
      %v971 = vsel %vm957, %v945, 0
      %v974 = vsel %vm957, %v946, 0
      %v977 = vsel %vm957, %v947, 0
      %v980 = vsel %vm957, %v948, 0
      %v983 = vsel %vm957, %v949, 0
      %v986 = vsel %vm957, %v950, 0
      %v989 = vsel %vm957, %v951, 0
      %v992 = vsel %vm957, %v952, 0
      %v995 = vsel %vm957, %v953, 0
      %v998 = vsel %vm957, %v954, 0
      %v1001 = vsel %vm957, %v955, 0
      %v1004 = vsel %vm957, %v956, 0
      %vm1006 = vcmask 1043456
      %v1008 = vsel %vm1006, %v899, 0
      %1010 = vmatprep.subr.bf16.mxu0 0
      %1011 = vmatpush1.bf16.msra.mxu0 %v1008
      %1012 = vmatprep.subr.bf16.mxu0 0
      %1013 = vmatpush1.bf16.msra.mxu0 0
      %1014 = vmatprep.subr.bf16.mxu0 0
      %1015 = vmatpush1.bf16.msra.mxu0 0
      %1016 = vmatprep.subr.bf16.mxu0 0
      %1017 = vmatpush1.bf16.msra.mxu0 0
      %1018 = vmatprep.subr.bf16.mxu0 0
      %1019 = vmatpush1.bf16.msra.mxu0 0
      %1020 = vmatprep.subr.bf16.mxu0 0
      %1021 = vmatpush1.bf16.msra.mxu0 0
      %1022 = vmatprep.subr.bf16.mxu0 0
      %1023 = vmatpush1.bf16.msra.mxu0 0
      %1024 = vmatprep.subr.bf16.mxu0 0
      %1025 = vmatpush1.bf16.msra.mxu0 0
      %1026 = vmatprep.subr.bf16.mxu0 0
      %1027 = vmatpush1.bf16.msra.mxu0 0
      %1028 = vmatprep.subr.bf16.mxu0 0
      %1029 = vmatpush1.bf16.msra.mxu0 0
      %1030 = vmatprep.subr.bf16.mxu0 0
      %1031 = vmatpush1.bf16.msra.mxu0 0
      %1032 = vmatprep.subr.bf16.mxu0 0
      %1033 = vmatpush1.bf16.msra.mxu0 0
      %1034 = vmatprep.subr.bf16.mxu0 0
      %1035 = vmatpush1.bf16.msra.mxu0 0
      %1036 = vmatprep.subr.bf16.mxu0 0
      %1037 = vmatpush1.bf16.msra.mxu0 0
      %1038 = vmatprep.subr.bf16.mxu0 0
      %1039 = vmatpush1.bf16.msra.mxu0 0
      %1040 = vmatprep.subr.bf16.mxu0 0
      %1041 = vmatpush1.bf16.msra.mxu0 0
      %1042 = vmatprep.mubr.bf16.mxu0 0
      %1043 = vmatmul.mubr.bf16.gmra.mrb[0].mxu0 %v959
      %v1044 = vpop.f32.mrb[0].mxu0
      %v1045 = vadd.f32 0.0, %v1044
      %v1046 = vpop.f32.mrb[0].mxu0
      %v1047 = vpop.f32.mrb[0].mxu0
      %v1048 = vadd.f32 0.0, %v1047
      %v1049 = vpop.f32.mrb[0].mxu0
      %1050 = vmatprep.mubr.bf16.mxu0 0
      %1051 = vmatmul.mubr.bf16.gmra.mrb[0].mxu0 %v962
      %v1052 = vpop.f32.mrb[0].mxu0
      %v1053 = vadd.f32 0.0, %v1052
      %v1054 = vpop.f32.mrb[0].mxu0
      %v1055 = vpop.f32.mrb[0].mxu0
      %v1056 = vadd.f32 0.0, %v1055
      %v1057 = vpop.f32.mrb[0].mxu0
      %1058 = vmatprep.mubr.bf16.mxu0 0
      %1059 = vmatmul.mubr.bf16.gmra.mrb[0].mxu0 %v965
      %v1060 = vpop.f32.mrb[0].mxu0
      %v1061 = vadd.f32 0.0, %v1060
      %v1062 = vpop.f32.mrb[0].mxu0
      %v1063 = vpop.f32.mrb[0].mxu0
      %v1064 = vadd.f32 0.0, %v1063
      %v1065 = vpop.f32.mrb[0].mxu0
      %1066 = vmatprep.mubr.bf16.mxu0 0
      %1067 = vmatmul.mubr.bf16.gmra.mrb[0].mxu0 %v968
      %v1068 = vpop.f32.mrb[0].mxu0
      %v1069 = vadd.f32 0.0, %v1068
      %v1070 = vpop.f32.mrb[0].mxu0
      %v1071 = vpop.f32.mrb[0].mxu0
      %v1072 = vadd.f32 0.0, %v1071
      %v1073 = vpop.f32.mrb[0].mxu0
      %1074 = vmatprep.mubr.bf16.mxu0 0
      %1075 = vmatmul.mubr.bf16.gmra.mrb[0].mxu0 %v971
      %v1076 = vpop.f32.mrb[0].mxu0
      %v1077 = vadd.f32 0.0, %v1076
      %v1078 = vpop.f32.mrb[0].mxu0
      %v1079 = vpop.f32.mrb[0].mxu0
      %v1080 = vadd.f32 0.0, %v1079
      %v1081 = vpop.f32.mrb[0].mxu0
      %1082 = vmatprep.mubr.bf16.mxu0 0
      %1083 = vmatmul.mubr.bf16.gmra.mrb[0].mxu0 %v974
      %v1084 = vpop.f32.mrb[0].mxu0
      %v1085 = vadd.f32 0.0, %v1084
      %v1086 = vpop.f32.mrb[0].mxu0
      %v1087 = vpop.f32.mrb[0].mxu0
      %v1088 = vadd.f32 0.0, %v1087
      %v1089 = vpop.f32.mrb[0].mxu0
      %1090 = vmatprep.mubr.bf16.mxu0 0
      %1091 = vmatmul.mubr.bf16.gmra.mrb[0].mxu0 %v977
      %v1092 = vpop.f32.mrb[0].mxu0
      %v1093 = vadd.f32 0.0, %v1092
      %v1094 = vpop.f32.mrb[0].mxu0
      %v1095 = vpop.f32.mrb[0].mxu0
      %v1096 = vadd.f32 0.0, %v1095
      %v1097 = vpop.f32.mrb[0].mxu0
      %1098 = vmatprep.mubr.bf16.mxu0 0
      %1099 = vmatmul.mubr.bf16.gmra.mrb[0].mxu0 %v980
      %v1100 = vpop.f32.mrb[0].mxu0
      %v1101 = vadd.f32 0.0, %v1100
      %v1102 = vpop.f32.mrb[0].mxu0
      %v1103 = vpop.f32.mrb[0].mxu0
      %v1104 = vadd.f32 0.0, %v1103
      %v1105 = vpop.f32.mrb[0].mxu0
      %1106 = vmatprep.mubr.bf16.mxu0 0
      %1107 = vmatmul.mubr.bf16.gmra.mrb[0].mxu0 %v983
      %v1108 = vpop.f32.mrb[0].mxu0
      %v1109 = vadd.f32 0.0, %v1108
      %v1110 = vpop.f32.mrb[0].mxu0
      %v1111 = vpop.f32.mrb[0].mxu0
      %v1112 = vadd.f32 0.0, %v1111
      %v1113 = vpop.f32.mrb[0].mxu0
      %1114 = vmatprep.mubr.bf16.mxu0 0
      %1115 = vmatmul.mubr.bf16.gmra.mrb[0].mxu0 %v986
      %v1116 = vpop.f32.mrb[0].mxu0
      %v1117 = vadd.f32 0.0, %v1116
      %v1118 = vpop.f32.mrb[0].mxu0
      %v1119 = vpop.f32.mrb[0].mxu0
      %v1120 = vadd.f32 0.0, %v1119
      %v1121 = vpop.f32.mrb[0].mxu0
      %1122 = vmatprep.mubr.bf16.mxu0 0
      %1123 = vmatmul.mubr.bf16.gmra.mrb[0].mxu0 %v989
      %v1124 = vpop.f32.mrb[0].mxu0
      %v1125 = vadd.f32 0.0, %v1124
      %v1126 = vpop.f32.mrb[0].mxu0
      %v1127 = vpop.f32.mrb[0].mxu0
      %v1128 = vadd.f32 0.0, %v1127
      %v1129 = vpop.f32.mrb[0].mxu0
      %1130 = vmatprep.mubr.bf16.mxu0 0
      %1131 = vmatmul.mubr.bf16.gmra.mrb[0].mxu0 %v992
      %v1132 = vpop.f32.mrb[0].mxu0
      %v1133 = vadd.f32 0.0, %v1132
      %v1134 = vpop.f32.mrb[0].mxu0
      %v1135 = vpop.f32.mrb[0].mxu0
      %v1136 = vadd.f32 0.0, %v1135
      %v1137 = vpop.f32.mrb[0].mxu0
      %1138 = vmatprep.mubr.bf16.mxu0 0
      %1139 = vmatmul.mubr.bf16.gmra.mrb[0].mxu0 %v995
      %v1140 = vpop.f32.mrb[0].mxu0
      %v1141 = vadd.f32 0.0, %v1140
      %v1142 = vpop.f32.mrb[0].mxu0
      %v1143 = vpop.f32.mrb[0].mxu0
      %v1144 = vadd.f32 0.0, %v1143
      %v1145 = vpop.f32.mrb[0].mxu0
      %1146 = vmatprep.mubr.bf16.mxu0 0
      %1147 = vmatmul.mubr.bf16.gmra.mrb[0].mxu0 %v998
      %v1148 = vpop.f32.mrb[0].mxu0
      %v1149 = vadd.f32 0.0, %v1148
      %v1150 = vpop.f32.mrb[0].mxu0
      %v1151 = vpop.f32.mrb[0].mxu0
      %v1152 = vadd.f32 0.0, %v1151
      %v1153 = vpop.f32.mrb[0].mxu0
      %1154 = vmatprep.mubr.bf16.mxu0 0
      %1155 = vmatmul.mubr.bf16.gmra.mrb[0].mxu0 %v1001
      %v1156 = vpop.f32.mrb[0].mxu0
      %v1157 = vadd.f32 0.0, %v1156
      %v1158 = vpop.f32.mrb[0].mxu0
      %v1159 = vpop.f32.mrb[0].mxu0
      %v1160 = vadd.f32 0.0, %v1159
      %v1161 = vpop.f32.mrb[0].mxu0
      %1162 = vmatprep.mubr.bf16.mxu0 0
      %1163 = vmatmul.mubr.bf16.gmra.mrb[0].mxu0 %v1004
      %v1164 = vpop.f32.mrb[0].mxu0
      %v1165 = vadd.f32 0.0, %v1164
      %v1166 = vpop.f32.mrb[0].mxu0
      %v1167 = vpop.f32.mrb[0].mxu0
      %v1168 = vadd.f32 0.0, %v1167
      %v1169 = vpop.f32.mrb[0].mxu0
      %1170 = vdwg.mxu0
      %v1171 = vunpack.c.l.b16 %v226
      %v1172 = vunpack.c.l.b16 %v227
      %v1173 = vunpack.c.l.b16 %v229
      %v1174 = vunpack.c.l.b16 %v230
      %v1175 = vunpack.c.l.b16 %v232
      %v1176 = vunpack.c.l.b16 %v233
      %v1177 = vunpack.c.l.b16 %v235
      %v1178 = vunpack.c.l.b16 %v236
      %v1179 = vunpack.c.l.b16 %v238
      %v1180 = vunpack.c.l.b16 %v239
      %v1181 = vunpack.c.l.b16 %v241
      %v1182 = vunpack.c.l.b16 %v242
      %v1183 = vunpack.c.l.b16 %v244
      %v1184 = vunpack.c.l.b16 %v245
      %v1185 = vunpack.c.l.b16 %v247
      %v1186 = vunpack.c.l.b16 %v248
      %v1187 = vunpack.c.l.b16 %v250
      %v1188 = vunpack.c.l.b16 %v251
      %v1189 = vunpack.c.l.b16 %v253
      %v1190 = vunpack.c.l.b16 %v254
      %v1191 = vunpack.c.l.b16 %v256
      %v1192 = vunpack.c.l.b16 %v257
      %v1193 = vunpack.c.l.b16 %v259
      %v1194 = vunpack.c.l.b16 %v260
      %v1195 = vunpack.c.l.b16 %v262
      %v1196 = vunpack.c.l.b16 %v263
      %v1197 = vunpack.c.l.b16 %v265
      %v1198 = vunpack.c.l.b16 %v266
      %v1199 = vunpack.c.l.b16 %v268
      %v1200 = vunpack.c.l.b16 %v269
      %v1201 = vunpack.c.l.b16 %v271
      %v1202 = vunpack.c.l.b16 %v272
      %v1203 = vpack.c.b16 %v1172, %v1171
      %v1204 = vpack.c.b16 %v1174, %v1173
      %v1205 = vpack.c.b16 %v1176, %v1175
      %v1206 = vpack.c.b16 %v1178, %v1177
      %v1207 = vpack.c.b16 %v1180, %v1179
      %v1208 = vpack.c.b16 %v1182, %v1181
      %v1209 = vpack.c.b16 %v1184, %v1183
      %v1210 = vpack.c.b16 %v1186, %v1185
      %v1211 = vpack.c.b16 %v1188, %v1187
      %v1212 = vpack.c.b16 %v1190, %v1189
      %v1213 = vpack.c.b16 %v1192, %v1191
      %v1214 = vpack.c.b16 %v1194, %v1193
      %v1215 = vpack.c.b16 %v1196, %v1195
      %v1216 = vpack.c.b16 %v1198, %v1197
      %v1217 = vpack.c.b16 %v1200, %v1199
      %v1218 = vpack.c.b16 %v1202, %v1201
      %v1220 = vsel %vm957, %v1203, 0
      %v1223 = vsel %vm957, %v1204, 0
      %v1226 = vsel %vm957, %v1205, 0
      %v1229 = vsel %vm957, %v1206, 0
      %v1232 = vsel %vm957, %v1207, 0
      %v1235 = vsel %vm957, %v1208, 0
      %v1238 = vsel %vm957, %v1209, 0
      %v1241 = vsel %vm957, %v1210, 0
      %v1244 = vsel %vm957, %v1211, 0
      %v1247 = vsel %vm957, %v1212, 0
      %v1250 = vsel %vm957, %v1213, 0
      %v1253 = vsel %vm957, %v1214, 0
      %v1256 = vsel %vm957, %v1215, 0
      %v1259 = vsel %vm957, %v1216, 0
      %v1262 = vsel %vm957, %v1217, 0
      %v1265 = vsel %vm957, %v1218, 0
      %v1268 = vsel %vm1006, %v898, 0
      %1270 = vmatprep.subr.bf16.mxu0 0
      %1271 = vmatpush1.bf16.msra.mxu0 %v1268
      %1272 = vmatprep.subr.bf16.mxu0 0
      %1273 = vmatpush1.bf16.msra.mxu0 0
      %1274 = vmatprep.subr.bf16.mxu0 0
      %1275 = vmatpush1.bf16.msra.mxu0 0
      %1276 = vmatprep.subr.bf16.mxu0 0
      %1277 = vmatpush1.bf16.msra.mxu0 0
      %1278 = vmatprep.subr.bf16.mxu0 0
      %1279 = vmatpush1.bf16.msra.mxu0 0
      %1280 = vmatprep.subr.bf16.mxu0 0
      %1281 = vmatpush1.bf16.msra.mxu0 0
      %1282 = vmatprep.subr.bf16.mxu0 0
      %1283 = vmatpush1.bf16.msra.mxu0 0
      %1284 = vmatprep.subr.bf16.mxu0 0
      %1285 = vmatpush1.bf16.msra.mxu0 0
      %1286 = vmatprep.subr.bf16.mxu0 0
      %1287 = vmatpush1.bf16.msra.mxu0 0
      %1288 = vmatprep.subr.bf16.mxu0 0
      %1289 = vmatpush1.bf16.msra.mxu0 0
      %1290 = vmatprep.subr.bf16.mxu0 0
      %1291 = vmatpush1.bf16.msra.mxu0 0
      %1292 = vmatprep.subr.bf16.mxu0 0
      %1293 = vmatpush1.bf16.msra.mxu0 0
      %1294 = vmatprep.subr.bf16.mxu0 0
      %1295 = vmatpush1.bf16.msra.mxu0 0
      %1296 = vmatprep.subr.bf16.mxu0 0
      %1297 = vmatpush1.bf16.msra.mxu0 0
      %1298 = vmatprep.subr.bf16.mxu0 0
      %1299 = vmatpush1.bf16.msra.mxu0 0
      %1300 = vmatprep.subr.bf16.mxu0 0
      %1301 = vmatpush1.bf16.msra.mxu0 0
      %1302 = vmatprep.mubr.bf16.mxu0 0
      %1303 = vmatmul.mubr.bf16.gmra.mrb[0].mxu0 %v1220
      %v1304 = vpop.f32.mrb[0].mxu0
      %v1305 = vadd.f32 %v1045, %v1304
      %v1306 = vpop.f32.mrb[0].mxu0
      %v1307 = vpop.f32.mrb[0].mxu0
      %v1308 = vadd.f32 %v1048, %v1307
      %v1309 = vpop.f32.mrb[0].mxu0
      %1310 = vmatprep.mubr.bf16.mxu0 0
      %1311 = vmatmul.mubr.bf16.gmra.mrb[0].mxu0 %v1223
      %v1312 = vpop.f32.mrb[0].mxu0
      %v1313 = vadd.f32 %v1053, %v1312
      %v1314 = vpop.f32.mrb[0].mxu0
      %v1315 = vpop.f32.mrb[0].mxu0
      %v1316 = vadd.f32 %v1056, %v1315
      %v1317 = vpop.f32.mrb[0].mxu0
      %1318 = vmatprep.mubr.bf16.mxu0 0
      %1319 = vmatmul.mubr.bf16.gmra.mrb[0].mxu0 %v1226
      %v1320 = vpop.f32.mrb[0].mxu0
      %v1321 = vadd.f32 %v1061, %v1320
      %v1322 = vpop.f32.mrb[0].mxu0
      %v1323 = vpop.f32.mrb[0].mxu0
      %v1324 = vadd.f32 %v1064, %v1323
      %v1325 = vpop.f32.mrb[0].mxu0
      %1326 = vmatprep.mubr.bf16.mxu0 0
      %1327 = vmatmul.mubr.bf16.gmra.mrb[0].mxu0 %v1229
      %v1328 = vpop.f32.mrb[0].mxu0
      %v1329 = vadd.f32 %v1069, %v1328
      %v1330 = vpop.f32.mrb[0].mxu0
      %v1331 = vpop.f32.mrb[0].mxu0
      %v1332 = vadd.f32 %v1072, %v1331
      %v1333 = vpop.f32.mrb[0].mxu0
      %1334 = vmatprep.mubr.bf16.mxu0 0
      %1335 = vmatmul.mubr.bf16.gmra.mrb[0].mxu0 %v1232
      %v1336 = vpop.f32.mrb[0].mxu0
      %v1337 = vadd.f32 %v1077, %v1336
      %v1338 = vpop.f32.mrb[0].mxu0
      %v1339 = vpop.f32.mrb[0].mxu0
      %v1340 = vadd.f32 %v1080, %v1339
      %v1341 = vpop.f32.mrb[0].mxu0
      %1342 = vmatprep.mubr.bf16.mxu0 0
      %1343 = vmatmul.mubr.bf16.gmra.mrb[0].mxu0 %v1235
      %v1344 = vpop.f32.mrb[0].mxu0
      %v1345 = vadd.f32 %v1085, %v1344
      %v1346 = vpop.f32.mrb[0].mxu0
      %v1347 = vpop.f32.mrb[0].mxu0
      %v1348 = vadd.f32 %v1088, %v1347
      %v1349 = vpop.f32.mrb[0].mxu0
      %1350 = vmatprep.mubr.bf16.mxu0 0
      %1351 = vmatmul.mubr.bf16.gmra.mrb[0].mxu0 %v1238
      %v1352 = vpop.f32.mrb[0].mxu0
      %v1353 = vadd.f32 %v1093, %v1352
      %v1354 = vpop.f32.mrb[0].mxu0
      %v1355 = vpop.f32.mrb[0].mxu0
      %v1356 = vadd.f32 %v1096, %v1355
      %v1357 = vpop.f32.mrb[0].mxu0
      %1358 = vmatprep.mubr.bf16.mxu0 0
      %1359 = vmatmul.mubr.bf16.gmra.mrb[0].mxu0 %v1241
      %v1360 = vpop.f32.mrb[0].mxu0
      %v1361 = vadd.f32 %v1101, %v1360
      %v1362 = vpop.f32.mrb[0].mxu0
      %v1363 = vpop.f32.mrb[0].mxu0
      %v1364 = vadd.f32 %v1104, %v1363
      %v1365 = vpop.f32.mrb[0].mxu0
      %1366 = vmatprep.mubr.bf16.mxu0 0
      %1367 = vmatmul.mubr.bf16.gmra.mrb[0].mxu0 %v1244
      %v1368 = vpop.f32.mrb[0].mxu0
      %v1369 = vadd.f32 %v1109, %v1368
      %v1370 = vpop.f32.mrb[0].mxu0
      %v1371 = vpop.f32.mrb[0].mxu0
      %v1372 = vadd.f32 %v1112, %v1371
      %v1373 = vpop.f32.mrb[0].mxu0
      %1374 = vmatprep.mubr.bf16.mxu0 0
      %1375 = vmatmul.mubr.bf16.gmra.mrb[0].mxu0 %v1247
      %v1376 = vpop.f32.mrb[0].mxu0
      %v1377 = vadd.f32 %v1117, %v1376
      %v1378 = vpop.f32.mrb[0].mxu0
      %v1379 = vpop.f32.mrb[0].mxu0
      %v1380 = vadd.f32 %v1120, %v1379
      %v1381 = vpop.f32.mrb[0].mxu0
      %1382 = vmatprep.mubr.bf16.mxu0 0
      %1383 = vmatmul.mubr.bf16.gmra.mrb[0].mxu0 %v1250
      %v1384 = vpop.f32.mrb[0].mxu0
      %v1385 = vadd.f32 %v1125, %v1384
      %v1386 = vpop.f32.mrb[0].mxu0
      %v1387 = vpop.f32.mrb[0].mxu0
      %v1388 = vadd.f32 %v1128, %v1387
      %v1389 = vpop.f32.mrb[0].mxu0
      %1390 = vmatprep.mubr.bf16.mxu0 0
      %1391 = vmatmul.mubr.bf16.gmra.mrb[0].mxu0 %v1253
      %v1392 = vpop.f32.mrb[0].mxu0
      %v1393 = vadd.f32 %v1133, %v1392
      %v1394 = vpop.f32.mrb[0].mxu0
      %v1395 = vpop.f32.mrb[0].mxu0
      %v1396 = vadd.f32 %v1136, %v1395
      %v1397 = vpop.f32.mrb[0].mxu0
      %1398 = vmatprep.mubr.bf16.mxu0 0
      %1399 = vmatmul.mubr.bf16.gmra.mrb[0].mxu0 %v1256
      %v1400 = vpop.f32.mrb[0].mxu0
      %v1401 = vadd.f32 %v1141, %v1400
      %v1402 = vpop.f32.mrb[0].mxu0
      %v1403 = vpop.f32.mrb[0].mxu0
      %v1404 = vadd.f32 %v1144, %v1403
      %v1405 = vpop.f32.mrb[0].mxu0
      %1406 = vmatprep.mubr.bf16.mxu0 0
      %1407 = vmatmul.mubr.bf16.gmra.mrb[0].mxu0 %v1259
      %v1408 = vpop.f32.mrb[0].mxu0
      %v1409 = vadd.f32 %v1149, %v1408
      %v1410 = vpop.f32.mrb[0].mxu0
      %v1411 = vpop.f32.mrb[0].mxu0
      %v1412 = vadd.f32 %v1152, %v1411
      %v1413 = vpop.f32.mrb[0].mxu0
      %1414 = vmatprep.mubr.bf16.mxu0 0
      %1415 = vmatmul.mubr.bf16.gmra.mrb[0].mxu0 %v1262
      %v1416 = vpop.f32.mrb[0].mxu0
      %v1417 = vadd.f32 %v1157, %v1416
      %v1418 = vpop.f32.mrb[0].mxu0
      %v1419 = vpop.f32.mrb[0].mxu0
      %v1420 = vadd.f32 %v1160, %v1419
      %v1421 = vpop.f32.mrb[0].mxu0
      %1422 = vmatprep.mubr.bf16.mxu0 0
      %1423 = vmatmul.mubr.bf16.gmra.mrb[0].mxu0 %v1265
      %v1424 = vpop.f32.mrb[0].mxu0
      %v1425 = vadd.f32 %v1165, %v1424
      %v1426 = vpop.f32.mrb[0].mxu0
      %v1427 = vpop.f32.mrb[0].mxu0
      %v1428 = vadd.f32 %v1168, %v1427
      %v1429 = vpop.f32.mrb[0].mxu0
      %1430 = vdwg.mxu0
      %v1431 = vunpack.c.l.b16 %v721
      %v1432 = vunpack.c.l.b16 %v724
      %v1433 = vunpack.c.l.b16 %v728
      %v1434 = vunpack.c.l.b16 %v731
      %v1435 = vunpack.c.l.b16 %v735
      %v1436 = vunpack.c.l.b16 %v738
      %v1437 = vunpack.c.l.b16 %v742
      %v1438 = vunpack.c.l.b16 %v745
      %v1439 = vunpack.c.l.b16 %v749
      %v1440 = vunpack.c.l.b16 %v752
      %v1441 = vunpack.c.l.b16 %v756
      %v1442 = vunpack.c.l.b16 %v759
      %v1443 = vunpack.c.l.b16 %v763
      %v1444 = vunpack.c.l.b16 %v766
      %v1445 = vunpack.c.l.b16 %v770
      %v1446 = vunpack.c.l.b16 %v773
      %v1447 = vunpack.c.l.b16 %v777
      %v1448 = vunpack.c.l.b16 %v780
      %v1449 = vunpack.c.l.b16 %v784
      %v1450 = vunpack.c.l.b16 %v787
      %v1451 = vunpack.c.l.b16 %v791
      %v1452 = vunpack.c.l.b16 %v794
      %v1453 = vunpack.c.l.b16 %v798
      %v1454 = vunpack.c.l.b16 %v801
      %v1455 = vunpack.c.l.b16 %v805
      %v1456 = vunpack.c.l.b16 %v808
      %v1457 = vunpack.c.l.b16 %v812
      %v1458 = vunpack.c.l.b16 %v815
      %v1459 = vunpack.c.l.b16 %v819
      %v1460 = vunpack.c.l.b16 %v822
      %v1461 = vunpack.c.l.b16 %v826
      %v1462 = vunpack.c.l.b16 %v829
      %v1463 = vpack.c.b16 %v1432, %v1431
      %v1464 = vpack.c.b16 %v1434, %v1433
      %v1465 = vpack.c.b16 %v1436, %v1435
      %v1466 = vpack.c.b16 %v1438, %v1437
      %v1467 = vpack.c.b16 %v1440, %v1439
      %v1468 = vpack.c.b16 %v1442, %v1441
      %v1469 = vpack.c.b16 %v1444, %v1443
      %v1470 = vpack.c.b16 %v1446, %v1445
      %v1471 = vpack.c.b16 %v1448, %v1447
      %v1472 = vpack.c.b16 %v1450, %v1449
      %v1473 = vpack.c.b16 %v1452, %v1451
      %v1474 = vpack.c.b16 %v1454, %v1453
      %v1475 = vpack.c.b16 %v1456, %v1455
      %v1476 = vpack.c.b16 %v1458, %v1457
      %v1477 = vpack.c.b16 %v1460, %v1459
      %v1478 = vpack.c.b16 %v1462, %v1461
      %v1480 = vsel %vm957, %v1463, 0
      %v1483 = vsel %vm957, %v1464, 0
      %v1486 = vsel %vm957, %v1465, 0
      %v1489 = vsel %vm957, %v1466, 0
      %v1492 = vsel %vm957, %v1467, 0
      %v1495 = vsel %vm957, %v1468, 0
      %v1498 = vsel %vm957, %v1469, 0
      %v1501 = vsel %vm957, %v1470, 0
      %v1504 = vsel %vm957, %v1471, 0
      %v1507 = vsel %vm957, %v1472, 0
      %v1510 = vsel %vm957, %v1473, 0
      %v1513 = vsel %vm957, %v1474, 0
      %v1516 = vsel %vm957, %v1475, 0
      %v1519 = vsel %vm957, %v1476, 0
      %v1522 = vsel %vm957, %v1477, 0
      %v1525 = vsel %vm957, %v1478, 0
      %v1528 = vsel %vm1006, %v900, 0
      %1530 = vmatprep.subr.bf16.mxu0 0
      %1531 = vmatpush1.bf16.msra.mxu0 %v1528
      %1532 = vmatprep.subr.bf16.mxu0 0
      %1533 = vmatpush1.bf16.msra.mxu0 0
      %1534 = vmatprep.subr.bf16.mxu0 0
      %1535 = vmatpush1.bf16.msra.mxu0 0
      %1536 = vmatprep.subr.bf16.mxu0 0
      %1537 = vmatpush1.bf16.msra.mxu0 0
      %1538 = vmatprep.subr.bf16.mxu0 0
      %1539 = vmatpush1.bf16.msra.mxu0 0
      %1540 = vmatprep.subr.bf16.mxu0 0
      %1541 = vmatpush1.bf16.msra.mxu0 0
      %1542 = vmatprep.subr.bf16.mxu0 0
      %1543 = vmatpush1.bf16.msra.mxu0 0
      %1544 = vmatprep.subr.bf16.mxu0 0
      %1545 = vmatpush1.bf16.msra.mxu0 0
      %1546 = vmatprep.subr.bf16.mxu0 0
      %1547 = vmatpush1.bf16.msra.mxu0 0
      %1548 = vmatprep.subr.bf16.mxu0 0
      %1549 = vmatpush1.bf16.msra.mxu0 0
      %1550 = vmatprep.subr.bf16.mxu0 0
      %1551 = vmatpush1.bf16.msra.mxu0 0
      %1552 = vmatprep.subr.bf16.mxu0 0
      %1553 = vmatpush1.bf16.msra.mxu0 0
      %1554 = vmatprep.subr.bf16.mxu0 0
      %1555 = vmatpush1.bf16.msra.mxu0 0
      %1556 = vmatprep.subr.bf16.mxu0 0
      %1557 = vmatpush1.bf16.msra.mxu0 0
      %1558 = vmatprep.subr.bf16.mxu0 0
      %1559 = vmatpush1.bf16.msra.mxu0 0
      %1560 = vmatprep.subr.bf16.mxu0 0
      %1561 = vmatpush1.bf16.msra.mxu0 0
      %1562 = vmatprep.mubr.bf16.mxu0 0
      %1563 = vmatmul.mubr.bf16.gmra.mrb[0].mxu0 %v1480
      %v1564 = vpop.f32.mrb[0].mxu0
      %v1565 = vadd.f32 0.0, %v1564
      %v1566 = vpop.f32.mrb[0].mxu0
      %v1567 = vpop.f32.mrb[0].mxu0
      %v1568 = vadd.f32 0.0, %v1567
      %v1569 = vpop.f32.mrb[0].mxu0
      %1570 = vmatprep.mubr.bf16.mxu0 0
      %1571 = vmatmul.mubr.bf16.gmra.mrb[0].mxu0 %v1483
      %v1572 = vpop.f32.mrb[0].mxu0
      %v1573 = vadd.f32 0.0, %v1572
      %v1574 = vpop.f32.mrb[0].mxu0
      %v1575 = vpop.f32.mrb[0].mxu0
      %v1576 = vadd.f32 0.0, %v1575
      %v1577 = vpop.f32.mrb[0].mxu0
      %1578 = vmatprep.mubr.bf16.mxu0 0
      %1579 = vmatmul.mubr.bf16.gmra.mrb[0].mxu0 %v1486
      %v1580 = vpop.f32.mrb[0].mxu0
      %v1581 = vadd.f32 0.0, %v1580
      %v1582 = vpop.f32.mrb[0].mxu0
      %v1583 = vpop.f32.mrb[0].mxu0
      %v1584 = vadd.f32 0.0, %v1583
      %v1585 = vpop.f32.mrb[0].mxu0
      %1586 = vmatprep.mubr.bf16.mxu0 0
      %1587 = vmatmul.mubr.bf16.gmra.mrb[0].mxu0 %v1489
      %v1588 = vpop.f32.mrb[0].mxu0
      %v1589 = vadd.f32 0.0, %v1588
      %v1590 = vpop.f32.mrb[0].mxu0
      %v1591 = vpop.f32.mrb[0].mxu0
      %v1592 = vadd.f32 0.0, %v1591
      %v1593 = vpop.f32.mrb[0].mxu0
      %1594 = vmatprep.mubr.bf16.mxu0 0
      %1595 = vmatmul.mubr.bf16.gmra.mrb[0].mxu0 %v1492
      %v1596 = vpop.f32.mrb[0].mxu0
      %v1597 = vadd.f32 0.0, %v1596
      %v1598 = vpop.f32.mrb[0].mxu0
      %v1599 = vpop.f32.mrb[0].mxu0
      %v1600 = vadd.f32 0.0, %v1599
      %v1601 = vpop.f32.mrb[0].mxu0
      %1602 = vmatprep.mubr.bf16.mxu0 0
      %1603 = vmatmul.mubr.bf16.gmra.mrb[0].mxu0 %v1495
      %v1604 = vpop.f32.mrb[0].mxu0
      %v1605 = vadd.f32 0.0, %v1604
      %v1606 = vpop.f32.mrb[0].mxu0
      %v1607 = vpop.f32.mrb[0].mxu0
      %v1608 = vadd.f32 0.0, %v1607
      %v1609 = vpop.f32.mrb[0].mxu0
      %1610 = vmatprep.mubr.bf16.mxu0 0
      %1611 = vmatmul.mubr.bf16.gmra.mrb[0].mxu0 %v1498
      %v1612 = vpop.f32.mrb[0].mxu0
      %v1613 = vadd.f32 0.0, %v1612
      %v1614 = vpop.f32.mrb[0].mxu0
      %v1615 = vpop.f32.mrb[0].mxu0
      %v1616 = vadd.f32 0.0, %v1615
      %v1617 = vpop.f32.mrb[0].mxu0
      %1618 = vmatprep.mubr.bf16.mxu0 0
      %1619 = vmatmul.mubr.bf16.gmra.mrb[0].mxu0 %v1501
      %v1620 = vpop.f32.mrb[0].mxu0
      %v1621 = vadd.f32 0.0, %v1620
      %v1622 = vpop.f32.mrb[0].mxu0
      %v1623 = vpop.f32.mrb[0].mxu0
      %v1624 = vadd.f32 0.0, %v1623
      %v1625 = vpop.f32.mrb[0].mxu0
      %1626 = vmatprep.mubr.bf16.mxu0 0
      %1627 = vmatmul.mubr.bf16.gmra.mrb[0].mxu0 %v1504
      %v1628 = vpop.f32.mrb[0].mxu0
      %v1629 = vadd.f32 0.0, %v1628
      %v1630 = vpop.f32.mrb[0].mxu0
      %v1631 = vpop.f32.mrb[0].mxu0
      %v1632 = vadd.f32 0.0, %v1631
      %v1633 = vpop.f32.mrb[0].mxu0
      %1634 = vmatprep.mubr.bf16.mxu0 0
      %1635 = vmatmul.mubr.bf16.gmra.mrb[0].mxu0 %v1507
      %v1636 = vpop.f32.mrb[0].mxu0
      %v1637 = vadd.f32 0.0, %v1636
      %v1638 = vpop.f32.mrb[0].mxu0
      %v1639 = vpop.f32.mrb[0].mxu0
      %v1640 = vadd.f32 0.0, %v1639
      %v1641 = vpop.f32.mrb[0].mxu0
      %1642 = vmatprep.mubr.bf16.mxu0 0
      %1643 = vmatmul.mubr.bf16.gmra.mrb[0].mxu0 %v1510
      %v1644 = vpop.f32.mrb[0].mxu0
      %v1645 = vadd.f32 0.0, %v1644
      %v1646 = vpop.f32.mrb[0].mxu0
      %v1647 = vpop.f32.mrb[0].mxu0
      %v1648 = vadd.f32 0.0, %v1647
      %v1649 = vpop.f32.mrb[0].mxu0
      %1650 = vmatprep.mubr.bf16.mxu0 0
      %1651 = vmatmul.mubr.bf16.gmra.mrb[0].mxu0 %v1513
      %v1652 = vpop.f32.mrb[0].mxu0
      %v1653 = vadd.f32 0.0, %v1652
      %v1654 = vpop.f32.mrb[0].mxu0
      %v1655 = vpop.f32.mrb[0].mxu0
      %v1656 = vadd.f32 0.0, %v1655
      %v1657 = vpop.f32.mrb[0].mxu0
      %1658 = vmatprep.mubr.bf16.mxu0 0
      %1659 = vmatmul.mubr.bf16.gmra.mrb[0].mxu0 %v1516
      %v1660 = vpop.f32.mrb[0].mxu0
      %v1661 = vadd.f32 0.0, %v1660
      %v1662 = vpop.f32.mrb[0].mxu0
      %v1663 = vpop.f32.mrb[0].mxu0
      %v1664 = vadd.f32 0.0, %v1663
      %v1665 = vpop.f32.mrb[0].mxu0
      %1666 = vmatprep.mubr.bf16.mxu0 0
      %1667 = vmatmul.mubr.bf16.gmra.mrb[0].mxu0 %v1519
      %v1668 = vpop.f32.mrb[0].mxu0
      %v1669 = vadd.f32 0.0, %v1668
      %v1670 = vpop.f32.mrb[0].mxu0
      %v1671 = vpop.f32.mrb[0].mxu0
      %v1672 = vadd.f32 0.0, %v1671
      %v1673 = vpop.f32.mrb[0].mxu0
      %1674 = vmatprep.mubr.bf16.mxu0 0
      %1675 = vmatmul.mubr.bf16.gmra.mrb[0].mxu0 %v1522
      %v1676 = vpop.f32.mrb[0].mxu0
      %v1677 = vadd.f32 0.0, %v1676
      %v1678 = vpop.f32.mrb[0].mxu0
      %v1679 = vpop.f32.mrb[0].mxu0
      %v1680 = vadd.f32 0.0, %v1679
      %v1681 = vpop.f32.mrb[0].mxu0
      %1682 = vmatprep.mubr.bf16.mxu0 0
      %1683 = vmatmul.mubr.bf16.gmra.mrb[0].mxu0 %v1525
      %v1684 = vpop.f32.mrb[0].mxu0
      %v1685 = vadd.f32 0.0, %v1684
      %v1686 = vpop.f32.mrb[0].mxu0
      %v1687 = vpop.f32.mrb[0].mxu0
      %v1688 = vadd.f32 0.0, %v1687
      %v1689 = vpop.f32.mrb[0].mxu0
      %1690 = vdwg.mxu0
      %v1691 = vadd.f32 %v1305, %v1565
      %v1692 = vadd.f32 %v1308, %v1568
      %v1693 = vadd.f32 %v1313, %v1573
      %v1694 = vadd.f32 %v1316, %v1576
      %v1695 = vadd.f32 %v1321, %v1581
      %v1696 = vadd.f32 %v1324, %v1584
      %v1697 = vadd.f32 %v1329, %v1589
      %v1698 = vadd.f32 %v1332, %v1592
      %v1699 = vadd.f32 %v1337, %v1597
      %v1700 = vadd.f32 %v1340, %v1600
      %v1701 = vadd.f32 %v1345, %v1605
      %v1702 = vadd.f32 %v1348, %v1608
      %v1703 = vadd.f32 %v1353, %v1613
      %v1704 = vadd.f32 %v1356, %v1616
      %v1705 = vadd.f32 %v1361, %v1621
      %v1706 = vadd.f32 %v1364, %v1624
      %v1707 = vadd.f32 %v1369, %v1629
      %v1708 = vadd.f32 %v1372, %v1632
      %v1709 = vadd.f32 %v1377, %v1637
      %v1710 = vadd.f32 %v1380, %v1640
      %v1711 = vadd.f32 %v1385, %v1645
      %v1712 = vadd.f32 %v1388, %v1648
      %v1713 = vadd.f32 %v1393, %v1653
      %v1714 = vadd.f32 %v1396, %v1656
      %v1715 = vadd.f32 %v1401, %v1661
      %v1716 = vadd.f32 %v1404, %v1664
      %v1717 = vadd.f32 %v1409, %v1669
      %v1718 = vadd.f32 %v1412, %v1672
      %v1719 = vadd.f32 %v1417, %v1677
      %v1720 = vadd.f32 %v1420, %v1680
      %v1721 = vadd.f32 %v1425, %v1685
      %v1722 = vadd.f32 %v1428, %v1688
      %v1723 = vunpack.c.l.b16 %v274
      %v1724 = vunpack.c.l.b16 %v275
      %v1725 = vpack.c.b16 %v1724, %v1723
      %v1727 = vsel %vm957, %v1725, 0
      %v1730 = vsel %vm1006, %v901, 0
      %1732 = vmatprep.subr.bf16.mxu0 0
      %1733 = vmatpush1.bf16.msra.mxu0 %v1730
      %1734 = vmatprep.subr.bf16.mxu0 0
      %1735 = vmatpush1.bf16.msra.mxu0 0
      %1736 = vmatprep.subr.bf16.mxu0 0
      %1737 = vmatpush1.bf16.msra.mxu0 0
      %1738 = vmatprep.subr.bf16.mxu0 0
      %1739 = vmatpush1.bf16.msra.mxu0 0
      %1740 = vmatprep.subr.bf16.mxu0 0
      %1741 = vmatpush1.bf16.msra.mxu0 0
      %1742 = vmatprep.subr.bf16.mxu0 0
      %1743 = vmatpush1.bf16.msra.mxu0 0
      %1744 = vmatprep.subr.bf16.mxu0 0
      %1745 = vmatpush1.bf16.msra.mxu0 0
      %1746 = vmatprep.subr.bf16.mxu0 0
      %1747 = vmatpush1.bf16.msra.mxu0 0
      %1748 = vmatprep.subr.bf16.mxu0 0
      %1749 = vmatpush1.bf16.msra.mxu0 0
      %1750 = vmatprep.subr.bf16.mxu0 0
      %1751 = vmatpush1.bf16.msra.mxu0 0
      %1752 = vmatprep.subr.bf16.mxu0 0
      %1753 = vmatpush1.bf16.msra.mxu0 0
      %1754 = vmatprep.subr.bf16.mxu0 0
      %1755 = vmatpush1.bf16.msra.mxu0 0
      %1756 = vmatprep.subr.bf16.mxu0 0
      %1757 = vmatpush1.bf16.msra.mxu0 0
      %1758 = vmatprep.subr.bf16.mxu0 0
      %1759 = vmatpush1.bf16.msra.mxu0 0
      %1760 = vmatprep.subr.bf16.mxu0 0
      %1761 = vmatpush1.bf16.msra.mxu0 0
      %1762 = vmatprep.subr.bf16.mxu0 0
      %1763 = vmatpush1.bf16.msra.mxu0 0
      %1764 = vmatprep.mubr.bf16.mxu0 0
      %1765 = vmatmul.mubr.bf16.gmra.mrb[0].mxu0 %v1223
      %v1766 = vpop.f32.mrb[0].mxu0
      %v1767 = vadd.f32 0.0, %v1766
      %v1768 = vpop.f32.mrb[0].mxu0
      %v1769 = vpop.f32.mrb[0].mxu0
      %v1770 = vadd.f32 0.0, %v1769
      %v1771 = vpop.f32.mrb[0].mxu0
      %1772 = vmatprep.mubr.bf16.mxu0 0
      %1773 = vmatmul.mubr.bf16.gmra.mrb[0].mxu0 %v1226
      %v1774 = vpop.f32.mrb[0].mxu0
      %v1775 = vadd.f32 0.0, %v1774
      %v1776 = vpop.f32.mrb[0].mxu0
      %v1777 = vpop.f32.mrb[0].mxu0
      %v1778 = vadd.f32 0.0, %v1777
      %v1779 = vpop.f32.mrb[0].mxu0
      %1780 = vmatprep.mubr.bf16.mxu0 0
      %1781 = vmatmul.mubr.bf16.gmra.mrb[0].mxu0 %v1229
      %v1782 = vpop.f32.mrb[0].mxu0
      %v1783 = vadd.f32 0.0, %v1782
      %v1784 = vpop.f32.mrb[0].mxu0
      %v1785 = vpop.f32.mrb[0].mxu0
      %v1786 = vadd.f32 0.0, %v1785
      %v1787 = vpop.f32.mrb[0].mxu0
      %1788 = vmatprep.mubr.bf16.mxu0 0
      %1789 = vmatmul.mubr.bf16.gmra.mrb[0].mxu0 %v1232
      %v1790 = vpop.f32.mrb[0].mxu0
      %v1791 = vadd.f32 0.0, %v1790
      %v1792 = vpop.f32.mrb[0].mxu0
      %v1793 = vpop.f32.mrb[0].mxu0
      %v1794 = vadd.f32 0.0, %v1793
      %v1795 = vpop.f32.mrb[0].mxu0
      %1796 = vmatprep.mubr.bf16.mxu0 0
      %1797 = vmatmul.mubr.bf16.gmra.mrb[0].mxu0 %v1235
      %v1798 = vpop.f32.mrb[0].mxu0
      %v1799 = vadd.f32 0.0, %v1798
      %v1800 = vpop.f32.mrb[0].mxu0
      %v1801 = vpop.f32.mrb[0].mxu0
      %v1802 = vadd.f32 0.0, %v1801
      %v1803 = vpop.f32.mrb[0].mxu0
      %1804 = vmatprep.mubr.bf16.mxu0 0
      %1805 = vmatmul.mubr.bf16.gmra.mrb[0].mxu0 %v1238
      %v1806 = vpop.f32.mrb[0].mxu0
      %v1807 = vadd.f32 0.0, %v1806
      %v1808 = vpop.f32.mrb[0].mxu0
      %v1809 = vpop.f32.mrb[0].mxu0
      %v1810 = vadd.f32 0.0, %v1809
      %v1811 = vpop.f32.mrb[0].mxu0
      %1812 = vmatprep.mubr.bf16.mxu0 0
      %1813 = vmatmul.mubr.bf16.gmra.mrb[0].mxu0 %v1241
      %v1814 = vpop.f32.mrb[0].mxu0
      %v1815 = vadd.f32 0.0, %v1814
      %v1816 = vpop.f32.mrb[0].mxu0
      %v1817 = vpop.f32.mrb[0].mxu0
      %v1818 = vadd.f32 0.0, %v1817
      %v1819 = vpop.f32.mrb[0].mxu0
      %1820 = vmatprep.mubr.bf16.mxu0 0
      %1821 = vmatmul.mubr.bf16.gmra.mrb[0].mxu0 %v1244
      %v1822 = vpop.f32.mrb[0].mxu0
      %v1823 = vadd.f32 0.0, %v1822
      %v1824 = vpop.f32.mrb[0].mxu0
      %v1825 = vpop.f32.mrb[0].mxu0
      %v1826 = vadd.f32 0.0, %v1825
      %v1827 = vpop.f32.mrb[0].mxu0
      %1828 = vmatprep.mubr.bf16.mxu0 0
      %1829 = vmatmul.mubr.bf16.gmra.mrb[0].mxu0 %v1247
      %v1830 = vpop.f32.mrb[0].mxu0
      %v1831 = vadd.f32 0.0, %v1830
      %v1832 = vpop.f32.mrb[0].mxu0
      %v1833 = vpop.f32.mrb[0].mxu0
      %v1834 = vadd.f32 0.0, %v1833
      %v1835 = vpop.f32.mrb[0].mxu0
      %1836 = vmatprep.mubr.bf16.mxu0 0
      %1837 = vmatmul.mubr.bf16.gmra.mrb[0].mxu0 %v1250
      %v1838 = vpop.f32.mrb[0].mxu0
      %v1839 = vadd.f32 0.0, %v1838
      %v1840 = vpop.f32.mrb[0].mxu0
      %v1841 = vpop.f32.mrb[0].mxu0
      %v1842 = vadd.f32 0.0, %v1841
      %v1843 = vpop.f32.mrb[0].mxu0
      %1844 = vmatprep.mubr.bf16.mxu0 0
      %1845 = vmatmul.mubr.bf16.gmra.mrb[0].mxu0 %v1253
      %v1846 = vpop.f32.mrb[0].mxu0
      %v1847 = vadd.f32 0.0, %v1846
      %v1848 = vpop.f32.mrb[0].mxu0
      %v1849 = vpop.f32.mrb[0].mxu0
      %v1850 = vadd.f32 0.0, %v1849
      %v1851 = vpop.f32.mrb[0].mxu0
      %1852 = vmatprep.mubr.bf16.mxu0 0
      %1853 = vmatmul.mubr.bf16.gmra.mrb[0].mxu0 %v1256
      %v1854 = vpop.f32.mrb[0].mxu0
      %v1855 = vadd.f32 0.0, %v1854
      %v1856 = vpop.f32.mrb[0].mxu0
      %v1857 = vpop.f32.mrb[0].mxu0
      %v1858 = vadd.f32 0.0, %v1857
      %v1859 = vpop.f32.mrb[0].mxu0
      %1860 = vmatprep.mubr.bf16.mxu0 0
      %1861 = vmatmul.mubr.bf16.gmra.mrb[0].mxu0 %v1259
      %v1862 = vpop.f32.mrb[0].mxu0
      %v1863 = vadd.f32 0.0, %v1862
      %v1864 = vpop.f32.mrb[0].mxu0
      %v1865 = vpop.f32.mrb[0].mxu0
      %v1866 = vadd.f32 0.0, %v1865
      %v1867 = vpop.f32.mrb[0].mxu0
      %1868 = vmatprep.mubr.bf16.mxu0 0
      %1869 = vmatmul.mubr.bf16.gmra.mrb[0].mxu0 %v1262
      %v1870 = vpop.f32.mrb[0].mxu0
      %v1871 = vadd.f32 0.0, %v1870
      %v1872 = vpop.f32.mrb[0].mxu0
      %v1873 = vpop.f32.mrb[0].mxu0
      %v1874 = vadd.f32 0.0, %v1873
      %v1875 = vpop.f32.mrb[0].mxu0
      %1876 = vmatprep.mubr.bf16.mxu0 0
      %1877 = vmatmul.mubr.bf16.gmra.mrb[0].mxu0 %v1265
      %v1878 = vpop.f32.mrb[0].mxu0
      %v1879 = vadd.f32 0.0, %v1878
      %v1880 = vpop.f32.mrb[0].mxu0
      %v1881 = vpop.f32.mrb[0].mxu0
      %v1882 = vadd.f32 0.0, %v1881
      %v1883 = vpop.f32.mrb[0].mxu0
      %1884 = vmatprep.mubr.bf16.mxu0 0
      %1885 = vmatmul.mubr.bf16.gmra.mrb[0].mxu0 %v1727
      %v1886 = vpop.f32.mrb[0].mxu0
      %v1887 = vadd.f32 0.0, %v1886
      %v1888 = vpop.f32.mrb[0].mxu0
      %v1889 = vpop.f32.mrb[0].mxu0
      %v1890 = vadd.f32 0.0, %v1889
      %v1891 = vpop.f32.mrb[0].mxu0
      %1892 = vdwg.mxu0
      %v1893 = vadd.f32 %v1691, %v1767
      %v1894 = vadd.f32 %v1692, %v1770
      %v1895 = vadd.f32 %v1693, %v1775
      %v1896 = vadd.f32 %v1694, %v1778
      %v1897 = vadd.f32 %v1695, %v1783
      %v1898 = vadd.f32 %v1696, %v1786
      %v1899 = vadd.f32 %v1697, %v1791
      %v1900 = vadd.f32 %v1698, %v1794
      %v1901 = vadd.f32 %v1699, %v1799
      %v1902 = vadd.f32 %v1700, %v1802
      %v1903 = vadd.f32 %v1701, %v1807
      %v1904 = vadd.f32 %v1702, %v1810
      %v1905 = vadd.f32 %v1703, %v1815
      %v1906 = vadd.f32 %v1704, %v1818
      %v1907 = vadd.f32 %v1705, %v1823
      %v1908 = vadd.f32 %v1706, %v1826
      %v1909 = vadd.f32 %v1707, %v1831
      %v1910 = vadd.f32 %v1708, %v1834
      %v1911 = vadd.f32 %v1709, %v1839
      %v1912 = vadd.f32 %v1710, %v1842
      %v1913 = vadd.f32 %v1711, %v1847
      %v1914 = vadd.f32 %v1712, %v1850
      %v1915 = vadd.f32 %v1713, %v1855
      %v1916 = vadd.f32 %v1714, %v1858
      %v1917 = vadd.f32 %v1715, %v1863
      %v1918 = vadd.f32 %v1716, %v1866
      %v1919 = vadd.f32 %v1717, %v1871
      %v1920 = vadd.f32 %v1718, %v1874
      %v1921 = vadd.f32 %v1719, %v1879
      %v1922 = vadd.f32 %v1720, %v1882
      %v1923 = vadd.f32 %v1721, %v1887
      %v1924 = vadd.f32 %v1722, %v1890
      %v1925 = vunpack.c.l.b16 %v843
      %v1926 = vunpack.c.l.b16 %v853
      %v1927 = vpack.c.b16 %v1926, %v1925
      %v1929 = vsel %vm957, %v1927, 0
      %v1932 = vsel %vm1006, %v902, 0
      %1934 = vmatprep.subr.bf16.mxu0 0
      %1935 = vmatpush1.bf16.msra.mxu0 %v1932
      %1936 = vmatprep.subr.bf16.mxu0 0
      %1937 = vmatpush1.bf16.msra.mxu0 0
      %1938 = vmatprep.subr.bf16.mxu0 0
      %1939 = vmatpush1.bf16.msra.mxu0 0
      %1940 = vmatprep.subr.bf16.mxu0 0
      %1941 = vmatpush1.bf16.msra.mxu0 0
      %1942 = vmatprep.subr.bf16.mxu0 0
      %1943 = vmatpush1.bf16.msra.mxu0 0
      %1944 = vmatprep.subr.bf16.mxu0 0
      %1945 = vmatpush1.bf16.msra.mxu0 0
      %1946 = vmatprep.subr.bf16.mxu0 0
      %1947 = vmatpush1.bf16.msra.mxu0 0
      %1948 = vmatprep.subr.bf16.mxu0 0
      %1949 = vmatpush1.bf16.msra.mxu0 0
      %1950 = vmatprep.subr.bf16.mxu0 0
      %1951 = vmatpush1.bf16.msra.mxu0 0
      %1952 = vmatprep.subr.bf16.mxu0 0
      %1953 = vmatpush1.bf16.msra.mxu0 0
      %1954 = vmatprep.subr.bf16.mxu0 0
      %1955 = vmatpush1.bf16.msra.mxu0 0
      %1956 = vmatprep.subr.bf16.mxu0 0
      %1957 = vmatpush1.bf16.msra.mxu0 0
      %1958 = vmatprep.subr.bf16.mxu0 0
      %1959 = vmatpush1.bf16.msra.mxu0 0
      %1960 = vmatprep.subr.bf16.mxu0 0
      %1961 = vmatpush1.bf16.msra.mxu0 0
      %1962 = vmatprep.subr.bf16.mxu0 0
      %1963 = vmatpush1.bf16.msra.mxu0 0
      %1964 = vmatprep.subr.bf16.mxu0 0
      %1965 = vmatpush1.bf16.msra.mxu0 0
      %1966 = vmatprep.mubr.bf16.mxu0 0
      %1967 = vmatmul.mubr.bf16.gmra.mrb[0].mxu0 %v962
      %v1968 = vpop.f32.mrb[0].mxu0
      %v1969 = vadd.f32 0.0, %v1968
      %v1970 = vpop.f32.mrb[0].mxu0
      %v1971 = vpop.f32.mrb[0].mxu0
      %v1972 = vadd.f32 0.0, %v1971
      %v1973 = vpop.f32.mrb[0].mxu0
      %1974 = vmatprep.mubr.bf16.mxu0 0
      %1975 = vmatmul.mubr.bf16.gmra.mrb[0].mxu0 %v965
      %v1976 = vpop.f32.mrb[0].mxu0
      %v1977 = vadd.f32 0.0, %v1976
      %v1978 = vpop.f32.mrb[0].mxu0
      %v1979 = vpop.f32.mrb[0].mxu0
      %v1980 = vadd.f32 0.0, %v1979
      %v1981 = vpop.f32.mrb[0].mxu0
      %1982 = vmatprep.mubr.bf16.mxu0 0
      %1983 = vmatmul.mubr.bf16.gmra.mrb[0].mxu0 %v968
      %v1984 = vpop.f32.mrb[0].mxu0
      %v1985 = vadd.f32 0.0, %v1984
      %v1986 = vpop.f32.mrb[0].mxu0
      %v1987 = vpop.f32.mrb[0].mxu0
      %v1988 = vadd.f32 0.0, %v1987
      %v1989 = vpop.f32.mrb[0].mxu0
      %1990 = vmatprep.mubr.bf16.mxu0 0
      %1991 = vmatmul.mubr.bf16.gmra.mrb[0].mxu0 %v971
      %v1992 = vpop.f32.mrb[0].mxu0
      %v1993 = vadd.f32 0.0, %v1992
      %v1994 = vpop.f32.mrb[0].mxu0
      %v1995 = vpop.f32.mrb[0].mxu0
      %v1996 = vadd.f32 0.0, %v1995
      %v1997 = vpop.f32.mrb[0].mxu0
      %1998 = vmatprep.mubr.bf16.mxu0 0
      %1999 = vmatmul.mubr.bf16.gmra.mrb[0].mxu0 %v974
      %v2000 = vpop.f32.mrb[0].mxu0
      %v2001 = vadd.f32 0.0, %v2000
      %v2002 = vpop.f32.mrb[0].mxu0
      %v2003 = vpop.f32.mrb[0].mxu0
      %v2004 = vadd.f32 0.0, %v2003
      %v2005 = vpop.f32.mrb[0].mxu0
      %2006 = vmatprep.mubr.bf16.mxu0 0
      %2007 = vmatmul.mubr.bf16.gmra.mrb[0].mxu0 %v977
      %v2008 = vpop.f32.mrb[0].mxu0
      %v2009 = vadd.f32 0.0, %v2008
      %v2010 = vpop.f32.mrb[0].mxu0
      %v2011 = vpop.f32.mrb[0].mxu0
      %v2012 = vadd.f32 0.0, %v2011
      %v2013 = vpop.f32.mrb[0].mxu0
      %2014 = vmatprep.mubr.bf16.mxu0 0
      %2015 = vmatmul.mubr.bf16.gmra.mrb[0].mxu0 %v980
      %v2016 = vpop.f32.mrb[0].mxu0
      %v2017 = vadd.f32 0.0, %v2016
      %v2018 = vpop.f32.mrb[0].mxu0
      %v2019 = vpop.f32.mrb[0].mxu0
      %v2020 = vadd.f32 0.0, %v2019
      %v2021 = vpop.f32.mrb[0].mxu0
      %2022 = vmatprep.mubr.bf16.mxu0 0
      %2023 = vmatmul.mubr.bf16.gmra.mrb[0].mxu0 %v983
      %v2024 = vpop.f32.mrb[0].mxu0
      %v2025 = vadd.f32 0.0, %v2024
      %v2026 = vpop.f32.mrb[0].mxu0
      %v2027 = vpop.f32.mrb[0].mxu0
      %v2028 = vadd.f32 0.0, %v2027
      %v2029 = vpop.f32.mrb[0].mxu0
      %2030 = vmatprep.mubr.bf16.mxu0 0
      %2031 = vmatmul.mubr.bf16.gmra.mrb[0].mxu0 %v986
      %v2032 = vpop.f32.mrb[0].mxu0
      %v2033 = vadd.f32 0.0, %v2032
      %v2034 = vpop.f32.mrb[0].mxu0
      %v2035 = vpop.f32.mrb[0].mxu0
      %v2036 = vadd.f32 0.0, %v2035
      %v2037 = vpop.f32.mrb[0].mxu0
      %2038 = vmatprep.mubr.bf16.mxu0 0
      %2039 = vmatmul.mubr.bf16.gmra.mrb[0].mxu0 %v989
      %v2040 = vpop.f32.mrb[0].mxu0
      %v2041 = vadd.f32 0.0, %v2040
      %v2042 = vpop.f32.mrb[0].mxu0
      %v2043 = vpop.f32.mrb[0].mxu0
      %v2044 = vadd.f32 0.0, %v2043
      %v2045 = vpop.f32.mrb[0].mxu0
      %2046 = vmatprep.mubr.bf16.mxu0 0
      %2047 = vmatmul.mubr.bf16.gmra.mrb[0].mxu0 %v992
      %v2048 = vpop.f32.mrb[0].mxu0
      %v2049 = vadd.f32 0.0, %v2048
      %v2050 = vpop.f32.mrb[0].mxu0
      %v2051 = vpop.f32.mrb[0].mxu0
      %v2052 = vadd.f32 0.0, %v2051
      %v2053 = vpop.f32.mrb[0].mxu0
      %2054 = vmatprep.mubr.bf16.mxu0 0
      %2055 = vmatmul.mubr.bf16.gmra.mrb[0].mxu0 %v995
      %v2056 = vpop.f32.mrb[0].mxu0
      %v2057 = vadd.f32 0.0, %v2056
      %v2058 = vpop.f32.mrb[0].mxu0
      %v2059 = vpop.f32.mrb[0].mxu0
      %v2060 = vadd.f32 0.0, %v2059
      %v2061 = vpop.f32.mrb[0].mxu0
      %2062 = vmatprep.mubr.bf16.mxu0 0
      %2063 = vmatmul.mubr.bf16.gmra.mrb[0].mxu0 %v998
      %v2064 = vpop.f32.mrb[0].mxu0
      %v2065 = vadd.f32 0.0, %v2064
      %v2066 = vpop.f32.mrb[0].mxu0
      %v2067 = vpop.f32.mrb[0].mxu0
      %v2068 = vadd.f32 0.0, %v2067
      %v2069 = vpop.f32.mrb[0].mxu0
      %2070 = vmatprep.mubr.bf16.mxu0 0
      %2071 = vmatmul.mubr.bf16.gmra.mrb[0].mxu0 %v1001
      %v2072 = vpop.f32.mrb[0].mxu0
      %v2073 = vadd.f32 0.0, %v2072
      %v2074 = vpop.f32.mrb[0].mxu0
      %v2075 = vpop.f32.mrb[0].mxu0
      %v2076 = vadd.f32 0.0, %v2075
      %v2077 = vpop.f32.mrb[0].mxu0
      %2078 = vmatprep.mubr.bf16.mxu0 0
      %2079 = vmatmul.mubr.bf16.gmra.mrb[0].mxu0 %v1004
      %v2080 = vpop.f32.mrb[0].mxu0
      %v2081 = vadd.f32 0.0, %v2080
      %v2082 = vpop.f32.mrb[0].mxu0
      %v2083 = vpop.f32.mrb[0].mxu0
      %v2084 = vadd.f32 0.0, %v2083
      %v2085 = vpop.f32.mrb[0].mxu0
      %2086 = vmatprep.mubr.bf16.mxu0 0
      %2087 = vmatmul.mubr.bf16.gmra.mrb[0].mxu0 %v1929
      %v2088 = vpop.f32.mrb[0].mxu0
      %v2089 = vadd.f32 0.0, %v2088
      %v2090 = vpop.f32.mrb[0].mxu0
      %v2091 = vpop.f32.mrb[0].mxu0
      %v2092 = vadd.f32 0.0, %v2091
      %v2093 = vpop.f32.mrb[0].mxu0
      %2094 = vdwg.mxu0
      %v2095 = vadd.f32 %v1893, %v1969
      %v2096 = vadd.f32 %v1894, %v1972
      %v2097 = vadd.f32 %v1895, %v1977
      %v2098 = vadd.f32 %v1896, %v1980
      %v2099 = vadd.f32 %v1897, %v1985
      %v2100 = vadd.f32 %v1898, %v1988
      %v2101 = vadd.f32 %v1899, %v1993
      %v2102 = vadd.f32 %v1900, %v1996
      %v2103 = vadd.f32 %v1901, %v2001
      %v2104 = vadd.f32 %v1902, %v2004
      %v2105 = vadd.f32 %v1903, %v2009
      %v2106 = vadd.f32 %v1904, %v2012
      %v2107 = vadd.f32 %v1905, %v2017
      %v2108 = vadd.f32 %v1906, %v2020
      %v2109 = vadd.f32 %v1907, %v2025
      %v2110 = vadd.f32 %v1908, %v2028
      %v2111 = vadd.f32 %v1909, %v2033
      %v2112 = vadd.f32 %v1910, %v2036
      %v2113 = vadd.f32 %v1911, %v2041
      %v2114 = vadd.f32 %v1912, %v2044
      %v2115 = vadd.f32 %v1913, %v2049
      %v2116 = vadd.f32 %v1914, %v2052
      %v2117 = vadd.f32 %v1915, %v2057
      %v2118 = vadd.f32 %v1916, %v2060
      %v2119 = vadd.f32 %v1917, %v2065
      %v2120 = vadd.f32 %v1918, %v2068
      %v2121 = vadd.f32 %v1919, %v2073
      %v2122 = vadd.f32 %v1920, %v2076
      %v2123 = vadd.f32 %v1921, %v2081
      %v2124 = vadd.f32 %v1922, %v2084
      %v2125 = vadd.f32 %v1923, %v2089
      %v2126 = vadd.f32 %v1924, %v2092
      %v2127 = vunpack.c.l.b16 %v860
      %v2128 = vunpack.c.l.b16 %v863
      %v2129 = vpack.c.b16 %v2128, %v2127
      %v2131 = vsel %vm957, %v2129, 0
      %v2134 = vsel %vm1006, %v903, 0
      %2136 = vmatprep.subr.bf16.mxu0 0
      %2137 = vmatpush1.bf16.msra.mxu0 %v2134
      %2138 = vmatprep.subr.bf16.mxu0 0
      %2139 = vmatpush1.bf16.msra.mxu0 0
      %2140 = vmatprep.subr.bf16.mxu0 0
      %2141 = vmatpush1.bf16.msra.mxu0 0
      %2142 = vmatprep.subr.bf16.mxu0 0
      %2143 = vmatpush1.bf16.msra.mxu0 0
      %2144 = vmatprep.subr.bf16.mxu0 0
      %2145 = vmatpush1.bf16.msra.mxu0 0
      %2146 = vmatprep.subr.bf16.mxu0 0
      %2147 = vmatpush1.bf16.msra.mxu0 0
      %2148 = vmatprep.subr.bf16.mxu0 0
      %2149 = vmatpush1.bf16.msra.mxu0 0
      %2150 = vmatprep.subr.bf16.mxu0 0
      %2151 = vmatpush1.bf16.msra.mxu0 0
      %2152 = vmatprep.subr.bf16.mxu0 0
      %2153 = vmatpush1.bf16.msra.mxu0 0
      %2154 = vmatprep.subr.bf16.mxu0 0
      %2155 = vmatpush1.bf16.msra.mxu0 0
      %2156 = vmatprep.subr.bf16.mxu0 0
      %2157 = vmatpush1.bf16.msra.mxu0 0
      %2158 = vmatprep.subr.bf16.mxu0 0
      %2159 = vmatpush1.bf16.msra.mxu0 0
      %2160 = vmatprep.subr.bf16.mxu0 0
      %2161 = vmatpush1.bf16.msra.mxu0 0
      %2162 = vmatprep.subr.bf16.mxu0 0
      %2163 = vmatpush1.bf16.msra.mxu0 0
      %2164 = vmatprep.subr.bf16.mxu0 0
      %2165 = vmatpush1.bf16.msra.mxu0 0
      %2166 = vmatprep.subr.bf16.mxu0 0
      %2167 = vmatpush1.bf16.msra.mxu0 0
      %2168 = vmatprep.mubr.bf16.mxu0 0
      %2169 = vmatmul.mubr.bf16.gmra.mrb[0].mxu0 %v1483
      %v2170 = vpop.f32.mrb[0].mxu0
      %v2171 = vadd.f32 0.0, %v2170
      %v2172 = vpop.f32.mrb[0].mxu0
      %v2173 = vpop.f32.mrb[0].mxu0
      %v2174 = vadd.f32 0.0, %v2173
      %v2175 = vpop.f32.mrb[0].mxu0
      %2176 = vmatprep.mubr.bf16.mxu0 0
      %2177 = vmatmul.mubr.bf16.gmra.mrb[0].mxu0 %v1486
      %v2178 = vpop.f32.mrb[0].mxu0
      %v2179 = vadd.f32 0.0, %v2178
      %v2180 = vpop.f32.mrb[0].mxu0
      %v2181 = vpop.f32.mrb[0].mxu0
      %v2182 = vadd.f32 0.0, %v2181
      %v2183 = vpop.f32.mrb[0].mxu0
      %2184 = vmatprep.mubr.bf16.mxu0 0
      %2185 = vmatmul.mubr.bf16.gmra.mrb[0].mxu0 %v1489
      %v2186 = vpop.f32.mrb[0].mxu0
      %v2187 = vadd.f32 0.0, %v2186
      %v2188 = vpop.f32.mrb[0].mxu0
      %v2189 = vpop.f32.mrb[0].mxu0
      %v2190 = vadd.f32 0.0, %v2189
      %v2191 = vpop.f32.mrb[0].mxu0
      %2192 = vmatprep.mubr.bf16.mxu0 0
      %2193 = vmatmul.mubr.bf16.gmra.mrb[0].mxu0 %v1492
      %v2194 = vpop.f32.mrb[0].mxu0
      %v2195 = vadd.f32 0.0, %v2194
      %v2196 = vpop.f32.mrb[0].mxu0
      %v2197 = vpop.f32.mrb[0].mxu0
      %v2198 = vadd.f32 0.0, %v2197
      %v2199 = vpop.f32.mrb[0].mxu0
      %2200 = vmatprep.mubr.bf16.mxu0 0
      %2201 = vmatmul.mubr.bf16.gmra.mrb[0].mxu0 %v1495
      %v2202 = vpop.f32.mrb[0].mxu0
      %v2203 = vadd.f32 0.0, %v2202
      %v2204 = vpop.f32.mrb[0].mxu0
      %v2205 = vpop.f32.mrb[0].mxu0
      %v2206 = vadd.f32 0.0, %v2205
      %v2207 = vpop.f32.mrb[0].mxu0
      %2208 = vmatprep.mubr.bf16.mxu0 0
      %2209 = vmatmul.mubr.bf16.gmra.mrb[0].mxu0 %v1498
      %v2210 = vpop.f32.mrb[0].mxu0
      %v2211 = vadd.f32 0.0, %v2210
      %v2212 = vpop.f32.mrb[0].mxu0
      %v2213 = vpop.f32.mrb[0].mxu0
      %v2214 = vadd.f32 0.0, %v2213
      %v2215 = vpop.f32.mrb[0].mxu0
      %2216 = vmatprep.mubr.bf16.mxu0 0
      %2217 = vmatmul.mubr.bf16.gmra.mrb[0].mxu0 %v1501
      %v2218 = vpop.f32.mrb[0].mxu0
      %v2219 = vadd.f32 0.0, %v2218
      %v2220 = vpop.f32.mrb[0].mxu0
      %v2221 = vpop.f32.mrb[0].mxu0
      %v2222 = vadd.f32 0.0, %v2221
      %v2223 = vpop.f32.mrb[0].mxu0
      %2224 = vmatprep.mubr.bf16.mxu0 0
      %2225 = vmatmul.mubr.bf16.gmra.mrb[0].mxu0 %v1504
      %v2226 = vpop.f32.mrb[0].mxu0
      %v2227 = vadd.f32 0.0, %v2226
      %v2228 = vpop.f32.mrb[0].mxu0
      %v2229 = vpop.f32.mrb[0].mxu0
      %v2230 = vadd.f32 0.0, %v2229
      %v2231 = vpop.f32.mrb[0].mxu0
      %2232 = vmatprep.mubr.bf16.mxu0 0
      %2233 = vmatmul.mubr.bf16.gmra.mrb[0].mxu0 %v1507
      %v2234 = vpop.f32.mrb[0].mxu0
      %v2235 = vadd.f32 0.0, %v2234
      %v2236 = vpop.f32.mrb[0].mxu0
      %v2237 = vpop.f32.mrb[0].mxu0
      %v2238 = vadd.f32 0.0, %v2237
      %v2239 = vpop.f32.mrb[0].mxu0
      %2240 = vmatprep.mubr.bf16.mxu0 0
      %2241 = vmatmul.mubr.bf16.gmra.mrb[0].mxu0 %v1510
      %v2242 = vpop.f32.mrb[0].mxu0
      %v2243 = vadd.f32 0.0, %v2242
      %v2244 = vpop.f32.mrb[0].mxu0
      %v2245 = vpop.f32.mrb[0].mxu0
      %v2246 = vadd.f32 0.0, %v2245
      %v2247 = vpop.f32.mrb[0].mxu0
      %2248 = vmatprep.mubr.bf16.mxu0 0
      %2249 = vmatmul.mubr.bf16.gmra.mrb[0].mxu0 %v1513
      %v2250 = vpop.f32.mrb[0].mxu0
      %v2251 = vadd.f32 0.0, %v2250
      %v2252 = vpop.f32.mrb[0].mxu0
      %v2253 = vpop.f32.mrb[0].mxu0
      %v2254 = vadd.f32 0.0, %v2253
      %v2255 = vpop.f32.mrb[0].mxu0
      %2256 = vmatprep.mubr.bf16.mxu0 0
      %2257 = vmatmul.mubr.bf16.gmra.mrb[0].mxu0 %v1516
      %v2258 = vpop.f32.mrb[0].mxu0
      %v2259 = vadd.f32 0.0, %v2258
      %v2260 = vpop.f32.mrb[0].mxu0
      %v2261 = vpop.f32.mrb[0].mxu0
      %v2262 = vadd.f32 0.0, %v2261
      %v2263 = vpop.f32.mrb[0].mxu0
      %2264 = vmatprep.mubr.bf16.mxu0 0
      %2265 = vmatmul.mubr.bf16.gmra.mrb[0].mxu0 %v1519
      %v2266 = vpop.f32.mrb[0].mxu0
      %v2267 = vadd.f32 0.0, %v2266
      %v2268 = vpop.f32.mrb[0].mxu0
      %v2269 = vpop.f32.mrb[0].mxu0
      %v2270 = vadd.f32 0.0, %v2269
      %v2271 = vpop.f32.mrb[0].mxu0
      %2272 = vmatprep.mubr.bf16.mxu0 0
      %2273 = vmatmul.mubr.bf16.gmra.mrb[0].mxu0 %v1522
      %v2274 = vpop.f32.mrb[0].mxu0
      %v2275 = vadd.f32 0.0, %v2274
      %v2276 = vpop.f32.mrb[0].mxu0
      %v2277 = vpop.f32.mrb[0].mxu0
      %v2278 = vadd.f32 0.0, %v2277
      %v2279 = vpop.f32.mrb[0].mxu0
      %2280 = vmatprep.mubr.bf16.mxu0 0
      %2281 = vmatmul.mubr.bf16.gmra.mrb[0].mxu0 %v1525
      %v2282 = vpop.f32.mrb[0].mxu0
      %v2283 = vadd.f32 0.0, %v2282
      %v2284 = vpop.f32.mrb[0].mxu0
      %v2285 = vpop.f32.mrb[0].mxu0
      %v2286 = vadd.f32 0.0, %v2285
      %v2287 = vpop.f32.mrb[0].mxu0
      %2288 = vmatprep.mubr.bf16.mxu0 0
      %2289 = vmatmul.mubr.bf16.gmra.mrb[0].mxu0 %v2131
      %v2290 = vpop.f32.mrb[0].mxu0
      %v2291 = vadd.f32 0.0, %v2290
      %v2292 = vpop.f32.mrb[0].mxu0
      %v2293 = vpop.f32.mrb[0].mxu0
      %v2294 = vadd.f32 0.0, %v2293
      %v2295 = vpop.f32.mrb[0].mxu0
      %2296 = vdwg.mxu0
      %v2297 = vadd.f32 %v2095, %v2171
      %v2298 = vadd.f32 %v2096, %v2174
      %v2299 = vadd.f32 %v2097, %v2179
      %v2300 = vadd.f32 %v2098, %v2182
      %v2301 = vadd.f32 %v2099, %v2187
      %v2302 = vadd.f32 %v2100, %v2190
      %v2303 = vadd.f32 %v2101, %v2195
      %v2304 = vadd.f32 %v2102, %v2198
      %v2305 = vadd.f32 %v2103, %v2203
      %v2306 = vadd.f32 %v2104, %v2206
      %v2307 = vadd.f32 %v2105, %v2211
      %v2308 = vadd.f32 %v2106, %v2214
      %v2309 = vadd.f32 %v2107, %v2219
      %v2310 = vadd.f32 %v2108, %v2222
      %v2311 = vadd.f32 %v2109, %v2227
      %v2312 = vadd.f32 %v2110, %v2230
      %v2313 = vadd.f32 %v2111, %v2235
      %v2314 = vadd.f32 %v2112, %v2238
      %v2315 = vadd.f32 %v2113, %v2243
      %v2316 = vadd.f32 %v2114, %v2246
      %v2317 = vadd.f32 %v2115, %v2251
      %v2318 = vadd.f32 %v2116, %v2254
      %v2319 = vadd.f32 %v2117, %v2259
      %v2320 = vadd.f32 %v2118, %v2262
      %v2321 = vadd.f32 %v2119, %v2267
      %v2322 = vadd.f32 %v2120, %v2270
      %v2323 = vadd.f32 %v2121, %v2275
      %v2324 = vadd.f32 %v2122, %v2278
      %v2325 = vadd.f32 %v2123, %v2283
      %v2326 = vadd.f32 %v2124, %v2286
      %v2327 = vadd.f32 %v2125, %v2291
      %v2328 = vadd.f32 %v2126, %v2294
      %v2329 = vunpack.c.l.b16 %v277
      %v2330 = vunpack.c.l.b16 %v278
      %v2331 = vpack.c.b16 %v2330, %v2329
      %v2333 = vsel %vm957, %v2331, 0
      %v2336 = vsel %vm1006, %v904, 0
      %2338 = vmatprep.subr.bf16.mxu0 0
      %2339 = vmatpush1.bf16.msra.mxu0 %v2336
      %2340 = vmatprep.subr.bf16.mxu0 0
      %2341 = vmatpush1.bf16.msra.mxu0 0
      %2342 = vmatprep.subr.bf16.mxu0 0
      %2343 = vmatpush1.bf16.msra.mxu0 0
      %2344 = vmatprep.subr.bf16.mxu0 0
      %2345 = vmatpush1.bf16.msra.mxu0 0
      %2346 = vmatprep.subr.bf16.mxu0 0
      %2347 = vmatpush1.bf16.msra.mxu0 0
      %2348 = vmatprep.subr.bf16.mxu0 0
      %2349 = vmatpush1.bf16.msra.mxu0 0
      %2350 = vmatprep.subr.bf16.mxu0 0
      %2351 = vmatpush1.bf16.msra.mxu0 0
      %2352 = vmatprep.subr.bf16.mxu0 0
      %2353 = vmatpush1.bf16.msra.mxu0 0
      %2354 = vmatprep.subr.bf16.mxu0 0
      %2355 = vmatpush1.bf16.msra.mxu0 0
      %2356 = vmatprep.subr.bf16.mxu0 0
      %2357 = vmatpush1.bf16.msra.mxu0 0
      %2358 = vmatprep.subr.bf16.mxu0 0
      %2359 = vmatpush1.bf16.msra.mxu0 0
      %2360 = vmatprep.subr.bf16.mxu0 0
      %2361 = vmatpush1.bf16.msra.mxu0 0
      %2362 = vmatprep.subr.bf16.mxu0 0
      %2363 = vmatpush1.bf16.msra.mxu0 0
      %2364 = vmatprep.subr.bf16.mxu0 0
      %2365 = vmatpush1.bf16.msra.mxu0 0
      %2366 = vmatprep.subr.bf16.mxu0 0
      %2367 = vmatpush1.bf16.msra.mxu0 0
      %2368 = vmatprep.subr.bf16.mxu0 0
      %2369 = vmatpush1.bf16.msra.mxu0 0
      %2370 = vmatprep.mubr.bf16.mxu0 0
      %2371 = vmatmul.mubr.bf16.gmra.mrb[0].mxu0 %v1226
      %v2372 = vpop.f32.mrb[0].mxu0
      %v2373 = vadd.f32 0.0, %v2372
      %v2374 = vpop.f32.mrb[0].mxu0
      %v2375 = vpop.f32.mrb[0].mxu0
      %v2376 = vadd.f32 0.0, %v2375
      %v2377 = vpop.f32.mrb[0].mxu0
      %2378 = vmatprep.mubr.bf16.mxu0 0
      %2379 = vmatmul.mubr.bf16.gmra.mrb[0].mxu0 %v1229
      %v2380 = vpop.f32.mrb[0].mxu0
      %v2381 = vadd.f32 0.0, %v2380
      %v2382 = vpop.f32.mrb[0].mxu0
      %v2383 = vpop.f32.mrb[0].mxu0
      %v2384 = vadd.f32 0.0, %v2383
      %v2385 = vpop.f32.mrb[0].mxu0
      %2386 = vmatprep.mubr.bf16.mxu0 0
      %2387 = vmatmul.mubr.bf16.gmra.mrb[0].mxu0 %v1232
      %v2388 = vpop.f32.mrb[0].mxu0
      %v2389 = vadd.f32 0.0, %v2388
      %v2390 = vpop.f32.mrb[0].mxu0
      %v2391 = vpop.f32.mrb[0].mxu0
      %v2392 = vadd.f32 0.0, %v2391
      %v2393 = vpop.f32.mrb[0].mxu0
      %2394 = vmatprep.mubr.bf16.mxu0 0
      %2395 = vmatmul.mubr.bf16.gmra.mrb[0].mxu0 %v1235
      %v2396 = vpop.f32.mrb[0].mxu0
      %v2397 = vadd.f32 0.0, %v2396
      %v2398 = vpop.f32.mrb[0].mxu0
      %v2399 = vpop.f32.mrb[0].mxu0
      %v2400 = vadd.f32 0.0, %v2399
      %v2401 = vpop.f32.mrb[0].mxu0
      %2402 = vmatprep.mubr.bf16.mxu0 0
      %2403 = vmatmul.mubr.bf16.gmra.mrb[0].mxu0 %v1238
      %v2404 = vpop.f32.mrb[0].mxu0
      %v2405 = vadd.f32 0.0, %v2404
      %v2406 = vpop.f32.mrb[0].mxu0
      %v2407 = vpop.f32.mrb[0].mxu0
      %v2408 = vadd.f32 0.0, %v2407
      %v2409 = vpop.f32.mrb[0].mxu0
      %2410 = vmatprep.mubr.bf16.mxu0 0
      %2411 = vmatmul.mubr.bf16.gmra.mrb[0].mxu0 %v1241
      %v2412 = vpop.f32.mrb[0].mxu0
      %v2413 = vadd.f32 0.0, %v2412
      %v2414 = vpop.f32.mrb[0].mxu0
      %v2415 = vpop.f32.mrb[0].mxu0
      %v2416 = vadd.f32 0.0, %v2415
      %v2417 = vpop.f32.mrb[0].mxu0
      %2418 = vmatprep.mubr.bf16.mxu0 0
      %2419 = vmatmul.mubr.bf16.gmra.mrb[0].mxu0 %v1244
      %v2420 = vpop.f32.mrb[0].mxu0
      %v2421 = vadd.f32 0.0, %v2420
      %v2422 = vpop.f32.mrb[0].mxu0
      %v2423 = vpop.f32.mrb[0].mxu0
      %v2424 = vadd.f32 0.0, %v2423
      %v2425 = vpop.f32.mrb[0].mxu0
      %2426 = vmatprep.mubr.bf16.mxu0 0
      %2427 = vmatmul.mubr.bf16.gmra.mrb[0].mxu0 %v1247
      %v2428 = vpop.f32.mrb[0].mxu0
      %v2429 = vadd.f32 0.0, %v2428
      %v2430 = vpop.f32.mrb[0].mxu0
      %v2431 = vpop.f32.mrb[0].mxu0
      %v2432 = vadd.f32 0.0, %v2431
      %v2433 = vpop.f32.mrb[0].mxu0
      %2434 = vmatprep.mubr.bf16.mxu0 0
      %2435 = vmatmul.mubr.bf16.gmra.mrb[0].mxu0 %v1250
      %v2436 = vpop.f32.mrb[0].mxu0
      %v2437 = vadd.f32 0.0, %v2436
      %v2438 = vpop.f32.mrb[0].mxu0
      %v2439 = vpop.f32.mrb[0].mxu0
      %v2440 = vadd.f32 0.0, %v2439
      %v2441 = vpop.f32.mrb[0].mxu0
      %2442 = vmatprep.mubr.bf16.mxu0 0
      %2443 = vmatmul.mubr.bf16.gmra.mrb[0].mxu0 %v1253
      %v2444 = vpop.f32.mrb[0].mxu0
      %v2445 = vadd.f32 0.0, %v2444
      %v2446 = vpop.f32.mrb[0].mxu0
      %v2447 = vpop.f32.mrb[0].mxu0
      %v2448 = vadd.f32 0.0, %v2447
      %v2449 = vpop.f32.mrb[0].mxu0
      %2450 = vmatprep.mubr.bf16.mxu0 0
      %2451 = vmatmul.mubr.bf16.gmra.mrb[0].mxu0 %v1256
      %v2452 = vpop.f32.mrb[0].mxu0
      %v2453 = vadd.f32 0.0, %v2452
      %v2454 = vpop.f32.mrb[0].mxu0
      %v2455 = vpop.f32.mrb[0].mxu0
      %v2456 = vadd.f32 0.0, %v2455
      %v2457 = vpop.f32.mrb[0].mxu0
      %2458 = vmatprep.mubr.bf16.mxu0 0
      %2459 = vmatmul.mubr.bf16.gmra.mrb[0].mxu0 %v1259
      %v2460 = vpop.f32.mrb[0].mxu0
      %v2461 = vadd.f32 0.0, %v2460
      %v2462 = vpop.f32.mrb[0].mxu0
      %v2463 = vpop.f32.mrb[0].mxu0
      %v2464 = vadd.f32 0.0, %v2463
      %v2465 = vpop.f32.mrb[0].mxu0
      %2466 = vmatprep.mubr.bf16.mxu0 0
      %2467 = vmatmul.mubr.bf16.gmra.mrb[0].mxu0 %v1262
      %v2468 = vpop.f32.mrb[0].mxu0
      %v2469 = vadd.f32 0.0, %v2468
      %v2470 = vpop.f32.mrb[0].mxu0
      %v2471 = vpop.f32.mrb[0].mxu0
      %v2472 = vadd.f32 0.0, %v2471
      %v2473 = vpop.f32.mrb[0].mxu0
      %2474 = vmatprep.mubr.bf16.mxu0 0
      %2475 = vmatmul.mubr.bf16.gmra.mrb[0].mxu0 %v1265
      %v2476 = vpop.f32.mrb[0].mxu0
      %v2477 = vadd.f32 0.0, %v2476
      %v2478 = vpop.f32.mrb[0].mxu0
      %v2479 = vpop.f32.mrb[0].mxu0
      %v2480 = vadd.f32 0.0, %v2479
      %v2481 = vpop.f32.mrb[0].mxu0
      %2482 = vmatprep.mubr.bf16.mxu0 0
      %2483 = vmatmul.mubr.bf16.gmra.mrb[0].mxu0 %v1727
      %v2484 = vpop.f32.mrb[0].mxu0
      %v2485 = vadd.f32 0.0, %v2484
      %v2486 = vpop.f32.mrb[0].mxu0
      %v2487 = vpop.f32.mrb[0].mxu0
      %v2488 = vadd.f32 0.0, %v2487
      %v2489 = vpop.f32.mrb[0].mxu0
      %2490 = vmatprep.mubr.bf16.mxu0 0
      %2491 = vmatmul.mubr.bf16.gmra.mrb[0].mxu0 %v2333
      %v2492 = vpop.f32.mrb[0].mxu0
      %v2493 = vadd.f32 0.0, %v2492
      %v2494 = vpop.f32.mrb[0].mxu0
      %v2495 = vpop.f32.mrb[0].mxu0
      %v2496 = vadd.f32 0.0, %v2495
      %v2497 = vpop.f32.mrb[0].mxu0
      %2498 = vdwg.mxu0
      %v2499 = vadd.f32 %v2297, %v2373
      %v2500 = vadd.f32 %v2298, %v2376
      %v2501 = vadd.f32 %v2299, %v2381
      %v2502 = vadd.f32 %v2300, %v2384
      %v2503 = vadd.f32 %v2301, %v2389
      %v2504 = vadd.f32 %v2302, %v2392
      %v2505 = vadd.f32 %v2303, %v2397
      %v2506 = vadd.f32 %v2304, %v2400
      %v2507 = vadd.f32 %v2305, %v2405
      %v2508 = vadd.f32 %v2306, %v2408
      %v2509 = vadd.f32 %v2307, %v2413
      %v2510 = vadd.f32 %v2308, %v2416
      %v2511 = vadd.f32 %v2309, %v2421
      %v2512 = vadd.f32 %v2310, %v2424
      %v2513 = vadd.f32 %v2311, %v2429
      %v2514 = vadd.f32 %v2312, %v2432
      %v2515 = vadd.f32 %v2313, %v2437
      %v2516 = vadd.f32 %v2314, %v2440
      %v2517 = vadd.f32 %v2315, %v2445
      %v2518 = vadd.f32 %v2316, %v2448
      %v2519 = vadd.f32 %v2317, %v2453
      %v2520 = vadd.f32 %v2318, %v2456
      %v2521 = vadd.f32 %v2319, %v2461
      %v2522 = vadd.f32 %v2320, %v2464
      %v2523 = vadd.f32 %v2321, %v2469
      %v2524 = vadd.f32 %v2322, %v2472
      %v2525 = vadd.f32 %v2323, %v2477
      %v2526 = vadd.f32 %v2324, %v2480
      %v2527 = vadd.f32 %v2325, %v2485
      %v2528 = vadd.f32 %v2326, %v2488
      %v2529 = vadd.f32 %v2327, %v2493
      %v2530 = vadd.f32 %v2328, %v2496
      %v2531 = vunpack.c.l.b16 %v877
      %v2532 = vunpack.c.l.b16 %v887
      %v2533 = vpack.c.b16 %v2532, %v2531
      %v2535 = vsel %vm957, %v2533, 0
      %v2538 = vsel %vm1006, %v905, 0
      %2540 = vmatprep.subr.bf16.mxu0 0
      %2541 = vmatpush1.bf16.msra.mxu0 %v2538
      %2542 = vmatprep.subr.bf16.mxu0 0
      %2543 = vmatpush1.bf16.msra.mxu0 0
      %2544 = vmatprep.subr.bf16.mxu0 0
      %2545 = vmatpush1.bf16.msra.mxu0 0
      %2546 = vmatprep.subr.bf16.mxu0 0
      %2547 = vmatpush1.bf16.msra.mxu0 0
      %2548 = vmatprep.subr.bf16.mxu0 0
      %2549 = vmatpush1.bf16.msra.mxu0 0
      %2550 = vmatprep.subr.bf16.mxu0 0
      %2551 = vmatpush1.bf16.msra.mxu0 0
      %2552 = vmatprep.subr.bf16.mxu0 0
      %2553 = vmatpush1.bf16.msra.mxu0 0
      %2554 = vmatprep.subr.bf16.mxu0 0
      %2555 = vmatpush1.bf16.msra.mxu0 0
      %2556 = vmatprep.subr.bf16.mxu0 0
      %2557 = vmatpush1.bf16.msra.mxu0 0
      %2558 = vmatprep.subr.bf16.mxu0 0
      %2559 = vmatpush1.bf16.msra.mxu0 0
      %2560 = vmatprep.subr.bf16.mxu0 0
      %2561 = vmatpush1.bf16.msra.mxu0 0
      %2562 = vmatprep.subr.bf16.mxu0 0
      %2563 = vmatpush1.bf16.msra.mxu0 0
      %2564 = vmatprep.subr.bf16.mxu0 0
      %2565 = vmatpush1.bf16.msra.mxu0 0
      %2566 = vmatprep.subr.bf16.mxu0 0
      %2567 = vmatpush1.bf16.msra.mxu0 0
      %2568 = vmatprep.subr.bf16.mxu0 0
      %2569 = vmatpush1.bf16.msra.mxu0 0
      %2570 = vmatprep.subr.bf16.mxu0 0
      %2571 = vmatpush1.bf16.msra.mxu0 0
      %2572 = vmatprep.mubr.bf16.mxu0 0
      %2573 = vmatmul.mubr.bf16.gmra.mrb[0].mxu0 %v965
      %v2574 = vpop.f32.mrb[0].mxu0
      %v2575 = vadd.f32 0.0, %v2574
      %v2576 = vpop.f32.mrb[0].mxu0
      %v2577 = vpop.f32.mrb[0].mxu0
      %v2578 = vadd.f32 0.0, %v2577
      %v2579 = vpop.f32.mrb[0].mxu0
      %2580 = vmatprep.mubr.bf16.mxu0 0
      %2581 = vmatmul.mubr.bf16.gmra.mrb[0].mxu0 %v968
      %v2582 = vpop.f32.mrb[0].mxu0
      %v2583 = vadd.f32 0.0, %v2582
      %v2584 = vpop.f32.mrb[0].mxu0
      %v2585 = vpop.f32.mrb[0].mxu0
      %v2586 = vadd.f32 0.0, %v2585
      %v2587 = vpop.f32.mrb[0].mxu0
      %2588 = vmatprep.mubr.bf16.mxu0 0
      %2589 = vmatmul.mubr.bf16.gmra.mrb[0].mxu0 %v971
      %v2590 = vpop.f32.mrb[0].mxu0
      %v2591 = vadd.f32 0.0, %v2590
      %v2592 = vpop.f32.mrb[0].mxu0
      %v2593 = vpop.f32.mrb[0].mxu0
      %v2594 = vadd.f32 0.0, %v2593
      %v2595 = vpop.f32.mrb[0].mxu0
      %2596 = vmatprep.mubr.bf16.mxu0 0
      %2597 = vmatmul.mubr.bf16.gmra.mrb[0].mxu0 %v974
      %v2598 = vpop.f32.mrb[0].mxu0
      %v2599 = vadd.f32 0.0, %v2598
      %v2600 = vpop.f32.mrb[0].mxu0
      %v2601 = vpop.f32.mrb[0].mxu0
      %v2602 = vadd.f32 0.0, %v2601
      %v2603 = vpop.f32.mrb[0].mxu0
      %2604 = vmatprep.mubr.bf16.mxu0 0
      %2605 = vmatmul.mubr.bf16.gmra.mrb[0].mxu0 %v977
      %v2606 = vpop.f32.mrb[0].mxu0
      %v2607 = vadd.f32 0.0, %v2606
      %v2608 = vpop.f32.mrb[0].mxu0
      %v2609 = vpop.f32.mrb[0].mxu0
      %v2610 = vadd.f32 0.0, %v2609
      %v2611 = vpop.f32.mrb[0].mxu0
      %2612 = vmatprep.mubr.bf16.mxu0 0
      %2613 = vmatmul.mubr.bf16.gmra.mrb[0].mxu0 %v980
      %v2614 = vpop.f32.mrb[0].mxu0
      %v2615 = vadd.f32 0.0, %v2614
      %v2616 = vpop.f32.mrb[0].mxu0
      %v2617 = vpop.f32.mrb[0].mxu0
      %v2618 = vadd.f32 0.0, %v2617
      %v2619 = vpop.f32.mrb[0].mxu0
      %2620 = vmatprep.mubr.bf16.mxu0 0
      %2621 = vmatmul.mubr.bf16.gmra.mrb[0].mxu0 %v983
      %v2622 = vpop.f32.mrb[0].mxu0
      %v2623 = vadd.f32 0.0, %v2622
      %v2624 = vpop.f32.mrb[0].mxu0
      %v2625 = vpop.f32.mrb[0].mxu0
      %v2626 = vadd.f32 0.0, %v2625
      %v2627 = vpop.f32.mrb[0].mxu0
      %2628 = vmatprep.mubr.bf16.mxu0 0
      %2629 = vmatmul.mubr.bf16.gmra.mrb[0].mxu0 %v986
      %v2630 = vpop.f32.mrb[0].mxu0
      %v2631 = vadd.f32 0.0, %v2630
      %v2632 = vpop.f32.mrb[0].mxu0
      %v2633 = vpop.f32.mrb[0].mxu0
      %v2634 = vadd.f32 0.0, %v2633
      %v2635 = vpop.f32.mrb[0].mxu0
      %2636 = vmatprep.mubr.bf16.mxu0 0
      %2637 = vmatmul.mubr.bf16.gmra.mrb[0].mxu0 %v989
      %v2638 = vpop.f32.mrb[0].mxu0
      %v2639 = vadd.f32 0.0, %v2638
      %v2640 = vpop.f32.mrb[0].mxu0
      %v2641 = vpop.f32.mrb[0].mxu0
      %v2642 = vadd.f32 0.0, %v2641
      %v2643 = vpop.f32.mrb[0].mxu0
      %2644 = vmatprep.mubr.bf16.mxu0 0
      %2645 = vmatmul.mubr.bf16.gmra.mrb[0].mxu0 %v992
      %v2646 = vpop.f32.mrb[0].mxu0
      %v2647 = vadd.f32 0.0, %v2646
      %v2648 = vpop.f32.mrb[0].mxu0
      %v2649 = vpop.f32.mrb[0].mxu0
      %v2650 = vadd.f32 0.0, %v2649
      %v2651 = vpop.f32.mrb[0].mxu0
      %2652 = vmatprep.mubr.bf16.mxu0 0
      %2653 = vmatmul.mubr.bf16.gmra.mrb[0].mxu0 %v995
      %v2654 = vpop.f32.mrb[0].mxu0
      %v2655 = vadd.f32 0.0, %v2654
      %v2656 = vpop.f32.mrb[0].mxu0
      %v2657 = vpop.f32.mrb[0].mxu0
      %v2658 = vadd.f32 0.0, %v2657
      %v2659 = vpop.f32.mrb[0].mxu0
      %2660 = vmatprep.mubr.bf16.mxu0 0
      %2661 = vmatmul.mubr.bf16.gmra.mrb[0].mxu0 %v998
      %v2662 = vpop.f32.mrb[0].mxu0
      %v2663 = vadd.f32 0.0, %v2662
      %v2664 = vpop.f32.mrb[0].mxu0
      %v2665 = vpop.f32.mrb[0].mxu0
      %v2666 = vadd.f32 0.0, %v2665
      %v2667 = vpop.f32.mrb[0].mxu0
      %2668 = vmatprep.mubr.bf16.mxu0 0
      %2669 = vmatmul.mubr.bf16.gmra.mrb[0].mxu0 %v1001
      %v2670 = vpop.f32.mrb[0].mxu0
      %v2671 = vadd.f32 0.0, %v2670
      %v2672 = vpop.f32.mrb[0].mxu0
      %v2673 = vpop.f32.mrb[0].mxu0
      %v2674 = vadd.f32 0.0, %v2673
      %v2675 = vpop.f32.mrb[0].mxu0
      %2676 = vmatprep.mubr.bf16.mxu0 0
      %2677 = vmatmul.mubr.bf16.gmra.mrb[0].mxu0 %v1004
      %v2678 = vpop.f32.mrb[0].mxu0
      %v2679 = vadd.f32 0.0, %v2678
      %v2680 = vpop.f32.mrb[0].mxu0
      %v2681 = vpop.f32.mrb[0].mxu0
      %v2682 = vadd.f32 0.0, %v2681
      %v2683 = vpop.f32.mrb[0].mxu0
      %2684 = vmatprep.mubr.bf16.mxu0 0
      %2685 = vmatmul.mubr.bf16.gmra.mrb[0].mxu0 %v1929
      %v2686 = vpop.f32.mrb[0].mxu0
      %v2687 = vadd.f32 0.0, %v2686
      %v2688 = vpop.f32.mrb[0].mxu0
      %v2689 = vpop.f32.mrb[0].mxu0
      %v2690 = vadd.f32 0.0, %v2689
      %v2691 = vpop.f32.mrb[0].mxu0
      %2692 = vmatprep.mubr.bf16.mxu0 0
      %2693 = vmatmul.mubr.bf16.gmra.mrb[0].mxu0 %v2535
      %v2694 = vpop.f32.mrb[0].mxu0
      %v2695 = vadd.f32 0.0, %v2694
      %v2696 = vpop.f32.mrb[0].mxu0
      %v2697 = vpop.f32.mrb[0].mxu0
      %v2698 = vadd.f32 0.0, %v2697
      %v2699 = vpop.f32.mrb[0].mxu0
      %2700 = vdwg.mxu0
      %v2701 = vadd.f32 %v2499, %v2575
      %v2702 = vadd.f32 %v2500, %v2578
      %v2703 = vadd.f32 %v2501, %v2583
      %v2704 = vadd.f32 %v2502, %v2586
      %v2705 = vadd.f32 %v2503, %v2591
      %v2706 = vadd.f32 %v2504, %v2594
      %v2707 = vadd.f32 %v2505, %v2599
      %v2708 = vadd.f32 %v2506, %v2602
      %v2709 = vadd.f32 %v2507, %v2607
      %v2710 = vadd.f32 %v2508, %v2610
      %v2711 = vadd.f32 %v2509, %v2615
      %v2712 = vadd.f32 %v2510, %v2618
      %v2713 = vadd.f32 %v2511, %v2623
      %v2714 = vadd.f32 %v2512, %v2626
      %v2715 = vadd.f32 %v2513, %v2631
      %v2716 = vadd.f32 %v2514, %v2634
      %v2717 = vadd.f32 %v2515, %v2639
      %v2718 = vadd.f32 %v2516, %v2642
      %v2719 = vadd.f32 %v2517, %v2647
      %v2720 = vadd.f32 %v2518, %v2650
      %v2721 = vadd.f32 %v2519, %v2655
      %v2722 = vadd.f32 %v2520, %v2658
      %v2723 = vadd.f32 %v2521, %v2663
      %v2724 = vadd.f32 %v2522, %v2666
      %v2725 = vadd.f32 %v2523, %v2671
      %v2726 = vadd.f32 %v2524, %v2674
      %v2727 = vadd.f32 %v2525, %v2679
      %v2728 = vadd.f32 %v2526, %v2682
      %v2729 = vadd.f32 %v2527, %v2687
      %v2730 = vadd.f32 %v2528, %v2690
      %v2731 = vadd.f32 %v2529, %v2695
      %v2732 = vadd.f32 %v2530, %v2698
      %v2733 = vunpack.c.l.b16 %v894
      %v2734 = vunpack.c.l.b16 %v897
      %v2735 = vpack.c.b16 %v2734, %v2733
      %v2737 = vsel %vm957, %v2735, 0
      %v2740 = vsel %vm1006, %v906, 0
      %2742 = vmatprep.subr.bf16.mxu0 0
      %2743 = vmatpush1.bf16.msra.mxu0 %v2740
      %2744 = vmatprep.subr.bf16.mxu0 0
      %2745 = vmatpush1.bf16.msra.mxu0 0
      %2746 = vmatprep.subr.bf16.mxu0 0
      %2747 = vmatpush1.bf16.msra.mxu0 0
      %2748 = vmatprep.subr.bf16.mxu0 0
      %2749 = vmatpush1.bf16.msra.mxu0 0
      %2750 = vmatprep.subr.bf16.mxu0 0
      %2751 = vmatpush1.bf16.msra.mxu0 0
      %2752 = vmatprep.subr.bf16.mxu0 0
      %2753 = vmatpush1.bf16.msra.mxu0 0
      %2754 = vmatprep.subr.bf16.mxu0 0
      %2755 = vmatpush1.bf16.msra.mxu0 0
      %2756 = vmatprep.subr.bf16.mxu0 0
      %2757 = vmatpush1.bf16.msra.mxu0 0
      %2758 = vmatprep.subr.bf16.mxu0 0
      %2759 = vmatpush1.bf16.msra.mxu0 0
      %2760 = vmatprep.subr.bf16.mxu0 0
      %2761 = vmatpush1.bf16.msra.mxu0 0
      %2762 = vmatprep.subr.bf16.mxu0 0
      %2763 = vmatpush1.bf16.msra.mxu0 0
      %2764 = vmatprep.subr.bf16.mxu0 0
      %2765 = vmatpush1.bf16.msra.mxu0 0
      %2766 = vmatprep.subr.bf16.mxu0 0
      %2767 = vmatpush1.bf16.msra.mxu0 0
      %2768 = vmatprep.subr.bf16.mxu0 0
      %2769 = vmatpush1.bf16.msra.mxu0 0
      %2770 = vmatprep.subr.bf16.mxu0 0
      %2771 = vmatpush1.bf16.msra.mxu0 0
      %2772 = vmatprep.subr.bf16.mxu0 0
      %2773 = vmatpush1.bf16.msra.mxu0 0
      %2774 = vmatprep.mubr.bf16.mxu0 0
      %2775 = vmatmul.mubr.bf16.gmra.mrb[0].mxu0 %v1486
      %v2776 = vpop.f32.mrb[0].mxu0
      %v2777 = vadd.f32 0.0, %v2776
      %v2778 = vpop.f32.mrb[0].mxu0
      %v2779 = vpop.f32.mrb[0].mxu0
      %v2780 = vadd.f32 0.0, %v2779
      %v2781 = vpop.f32.mrb[0].mxu0
      %2782 = vmatprep.mubr.bf16.mxu0 0
      %2783 = vmatmul.mubr.bf16.gmra.mrb[0].mxu0 %v1489
      %v2784 = vpop.f32.mrb[0].mxu0
      %v2785 = vadd.f32 0.0, %v2784
      %v2786 = vpop.f32.mrb[0].mxu0
      %v2787 = vpop.f32.mrb[0].mxu0
      %v2788 = vadd.f32 0.0, %v2787
      %v2789 = vpop.f32.mrb[0].mxu0
      %2790 = vmatprep.mubr.bf16.mxu0 0
      %2791 = vmatmul.mubr.bf16.gmra.mrb[0].mxu0 %v1492
      %v2792 = vpop.f32.mrb[0].mxu0
      %v2793 = vadd.f32 0.0, %v2792
      %v2794 = vpop.f32.mrb[0].mxu0
      %v2795 = vpop.f32.mrb[0].mxu0
      %v2796 = vadd.f32 0.0, %v2795
      %v2797 = vpop.f32.mrb[0].mxu0
      %2798 = vmatprep.mubr.bf16.mxu0 0
      %2799 = vmatmul.mubr.bf16.gmra.mrb[0].mxu0 %v1495
      %v2800 = vpop.f32.mrb[0].mxu0
      %v2801 = vadd.f32 0.0, %v2800
      %v2802 = vpop.f32.mrb[0].mxu0
      %v2803 = vpop.f32.mrb[0].mxu0
      %v2804 = vadd.f32 0.0, %v2803
      %v2805 = vpop.f32.mrb[0].mxu0
      %2806 = vmatprep.mubr.bf16.mxu0 0
      %2807 = vmatmul.mubr.bf16.gmra.mrb[0].mxu0 %v1498
      %v2808 = vpop.f32.mrb[0].mxu0
      %v2809 = vadd.f32 0.0, %v2808
      %v2810 = vpop.f32.mrb[0].mxu0
      %v2811 = vpop.f32.mrb[0].mxu0
      %v2812 = vadd.f32 0.0, %v2811
      %v2813 = vpop.f32.mrb[0].mxu0
      %2814 = vmatprep.mubr.bf16.mxu0 0
      %2815 = vmatmul.mubr.bf16.gmra.mrb[0].mxu0 %v1501
      %v2816 = vpop.f32.mrb[0].mxu0
      %v2817 = vadd.f32 0.0, %v2816
      %v2818 = vpop.f32.mrb[0].mxu0
      %v2819 = vpop.f32.mrb[0].mxu0
      %v2820 = vadd.f32 0.0, %v2819
      %v2821 = vpop.f32.mrb[0].mxu0
      %2822 = vmatprep.mubr.bf16.mxu0 0
      %2823 = vmatmul.mubr.bf16.gmra.mrb[0].mxu0 %v1504
      %v2824 = vpop.f32.mrb[0].mxu0
      %v2825 = vadd.f32 0.0, %v2824
      %v2826 = vpop.f32.mrb[0].mxu0
      %v2827 = vpop.f32.mrb[0].mxu0
      %v2828 = vadd.f32 0.0, %v2827
      %v2829 = vpop.f32.mrb[0].mxu0
      %2830 = vmatprep.mubr.bf16.mxu0 0
      %2831 = vmatmul.mubr.bf16.gmra.mrb[0].mxu0 %v1507
      %v2832 = vpop.f32.mrb[0].mxu0
      %v2833 = vadd.f32 0.0, %v2832
      %v2834 = vpop.f32.mrb[0].mxu0
      %v2835 = vpop.f32.mrb[0].mxu0
      %v2836 = vadd.f32 0.0, %v2835
      %v2837 = vpop.f32.mrb[0].mxu0
      %2838 = vmatprep.mubr.bf16.mxu0 0
      %2839 = vmatmul.mubr.bf16.gmra.mrb[0].mxu0 %v1510
      %v2840 = vpop.f32.mrb[0].mxu0
      %v2841 = vadd.f32 0.0, %v2840
      %v2842 = vpop.f32.mrb[0].mxu0
      %v2843 = vpop.f32.mrb[0].mxu0
      %v2844 = vadd.f32 0.0, %v2843
      %v2845 = vpop.f32.mrb[0].mxu0
      %2846 = vmatprep.mubr.bf16.mxu0 0
      %2847 = vmatmul.mubr.bf16.gmra.mrb[0].mxu0 %v1513
      %v2848 = vpop.f32.mrb[0].mxu0
      %v2849 = vadd.f32 0.0, %v2848
      %v2850 = vpop.f32.mrb[0].mxu0
      %v2851 = vpop.f32.mrb[0].mxu0
      %v2852 = vadd.f32 0.0, %v2851
      %v2853 = vpop.f32.mrb[0].mxu0
      %2854 = vmatprep.mubr.bf16.mxu0 0
      %2855 = vmatmul.mubr.bf16.gmra.mrb[0].mxu0 %v1516
      %v2856 = vpop.f32.mrb[0].mxu0
      %v2857 = vadd.f32 0.0, %v2856
      %v2858 = vpop.f32.mrb[0].mxu0
      %v2859 = vpop.f32.mrb[0].mxu0
      %v2860 = vadd.f32 0.0, %v2859
      %v2861 = vpop.f32.mrb[0].mxu0
      %2862 = vmatprep.mubr.bf16.mxu0 0
      %2863 = vmatmul.mubr.bf16.gmra.mrb[0].mxu0 %v1519
      %v2864 = vpop.f32.mrb[0].mxu0
      %v2865 = vadd.f32 0.0, %v2864
      %v2866 = vpop.f32.mrb[0].mxu0
      %v2867 = vpop.f32.mrb[0].mxu0
      %v2868 = vadd.f32 0.0, %v2867
      %v2869 = vpop.f32.mrb[0].mxu0
      %2870 = vmatprep.mubr.bf16.mxu0 0
      %2871 = vmatmul.mubr.bf16.gmra.mrb[0].mxu0 %v1522
      %v2872 = vpop.f32.mrb[0].mxu0
      %v2873 = vadd.f32 0.0, %v2872
      %v2874 = vpop.f32.mrb[0].mxu0
      %v2875 = vpop.f32.mrb[0].mxu0
      %v2876 = vadd.f32 0.0, %v2875
      %v2877 = vpop.f32.mrb[0].mxu0
      %2878 = vmatprep.mubr.bf16.mxu0 0
      %2879 = vmatmul.mubr.bf16.gmra.mrb[0].mxu0 %v1525
      %v2880 = vpop.f32.mrb[0].mxu0
      %v2881 = vadd.f32 0.0, %v2880
      %v2882 = vpop.f32.mrb[0].mxu0
      %v2883 = vpop.f32.mrb[0].mxu0
      %v2884 = vadd.f32 0.0, %v2883
      %v2885 = vpop.f32.mrb[0].mxu0
      %2886 = vmatprep.mubr.bf16.mxu0 0
      %2887 = vmatmul.mubr.bf16.gmra.mrb[0].mxu0 %v2131
      %v2888 = vpop.f32.mrb[0].mxu0
      %v2889 = vadd.f32 0.0, %v2888
      %v2890 = vpop.f32.mrb[0].mxu0
      %v2891 = vpop.f32.mrb[0].mxu0
      %v2892 = vadd.f32 0.0, %v2891
      %v2893 = vpop.f32.mrb[0].mxu0
      %2894 = vmatprep.mubr.bf16.mxu0 0
      %2895 = vmatmul.mubr.bf16.gmra.mrb[0].mxu0 %v2737
      %v2896 = vpop.f32.mrb[0].mxu0
      %v2897 = vadd.f32 0.0, %v2896
      %v2898 = vpop.f32.mrb[0].mxu0
      %v2899 = vpop.f32.mrb[0].mxu0
      %v2900 = vadd.f32 0.0, %v2899
      %v2901 = vpop.f32.mrb[0].mxu0
      %2902 = vdwg.mxu0
      %v2903 = vadd.f32 %v2701, %v2777
      %v2904 = vadd.f32 %v2702, %v2780
      %v2905 = vadd.f32 %v2703, %v2785
      %v2906 = vadd.f32 %v2704, %v2788
      %v2907 = vadd.f32 %v2705, %v2793
      %v2908 = vadd.f32 %v2706, %v2796
      %v2909 = vadd.f32 %v2707, %v2801
      %v2910 = vadd.f32 %v2708, %v2804
      %v2911 = vadd.f32 %v2709, %v2809
      %v2912 = vadd.f32 %v2710, %v2812
      %v2913 = vadd.f32 %v2711, %v2817
      %v2914 = vadd.f32 %v2712, %v2820
      %v2915 = vadd.f32 %v2713, %v2825
      %v2916 = vadd.f32 %v2714, %v2828
      %v2917 = vadd.f32 %v2715, %v2833
      %v2918 = vadd.f32 %v2716, %v2836
      %v2919 = vadd.f32 %v2717, %v2841
      %v2920 = vadd.f32 %v2718, %v2844
      %v2921 = vadd.f32 %v2719, %v2849
      %v2922 = vadd.f32 %v2720, %v2852
      %v2923 = vadd.f32 %v2721, %v2857
      %v2924 = vadd.f32 %v2722, %v2860
      %v2925 = vadd.f32 %v2723, %v2865
      %v2926 = vadd.f32 %v2724, %v2868
      %v2927 = vadd.f32 %v2725, %v2873
      %v2928 = vadd.f32 %v2726, %v2876
      %v2929 = vadd.f32 %v2727, %v2881
      %v2930 = vadd.f32 %v2728, %v2884
      %v2931 = vadd.f32 %v2729, %v2889
      %v2932 = vadd.f32 %v2730, %v2892
      %v2933 = vadd.f32 %v2731, %v2897
      %v2934 = vadd.f32 %v2732, %v2900
      %v2936 = vlaneseq
      %v2937 = vshrl.u32 %v2936, 7
      %v2938 = vsub.s32 0, %v2937
      %v2939 = vrot.slane %v907, %v2938
      %v2941 = vmul.f32 %v2903, %v2939
      %v2942 = vmul.f32 %v2904, %v2939
      %v2943 = vmul.f32 %v2905, %v2939
      %v2944 = vmul.f32 %v2906, %v2939
      %v2945 = vmul.f32 %v2907, %v2939
      %v2946 = vmul.f32 %v2908, %v2939
      %v2947 = vmul.f32 %v2909, %v2939
      %v2948 = vmul.f32 %v2910, %v2939
      %v2949 = vmul.f32 %v2911, %v2939
      %v2950 = vmul.f32 %v2912, %v2939
      %v2951 = vmul.f32 %v2913, %v2939
      %v2952 = vmul.f32 %v2914, %v2939
      %v2953 = vmul.f32 %v2915, %v2939
      %v2954 = vmul.f32 %v2916, %v2939
      %v2955 = vmul.f32 %v2917, %v2939
      %v2956 = vmul.f32 %v2918, %v2939
      %v2957 = vmul.f32 %v2919, %v2939
      %v2958 = vmul.f32 %v2920, %v2939
      %v2959 = vmul.f32 %v2921, %v2939
      %v2960 = vmul.f32 %v2922, %v2939
      %v2961 = vmul.f32 %v2923, %v2939
      %v2962 = vmul.f32 %v2924, %v2939
      %v2963 = vmul.f32 %v2925, %v2939
      %v2964 = vmul.f32 %v2926, %v2939
      %v2965 = vmul.f32 %v2927, %v2939
      %v2966 = vmul.f32 %v2928, %v2939
      %v2967 = vmul.f32 %v2929, %v2939
      %v2968 = vmul.f32 %v2930, %v2939
      %v2969 = vmul.f32 %v2931, %v2939
      %v2970 = vmul.f32 %v2932, %v2939
      %v2971 = vmul.f32 %v2933, %v2939
      %v2972 = vmul.f32 %v2934, %v2939
      %v2974 = vlaneseq
      %v2975 = vshrl.u32 %v2974, 7
      %v2976 = vsub.s32 0, %v2975
      %v2977 = vrot.slane %v908, %v2976
      %v2979 = vadd.f32 %v2941, %v2977
      %v2980 = vadd.f32 %v2942, %v2977
      %v2981 = vadd.f32 %v2943, %v2977
      %v2982 = vadd.f32 %v2944, %v2977
      %v2983 = vadd.f32 %v2945, %v2977
      %v2984 = vadd.f32 %v2946, %v2977
      %v2985 = vadd.f32 %v2947, %v2977
      %v2986 = vadd.f32 %v2948, %v2977
      %v2987 = vadd.f32 %v2949, %v2977
      %v2988 = vadd.f32 %v2950, %v2977
      %v2989 = vadd.f32 %v2951, %v2977
      %v2990 = vadd.f32 %v2952, %v2977
      %v2991 = vadd.f32 %v2953, %v2977
      %v2992 = vadd.f32 %v2954, %v2977
      %v2993 = vadd.f32 %v2955, %v2977
      %v2994 = vadd.f32 %v2956, %v2977
      %v2995 = vadd.f32 %v2957, %v2977
      %v2996 = vadd.f32 %v2958, %v2977
      %v2997 = vadd.f32 %v2959, %v2977
      %v2998 = vadd.f32 %v2960, %v2977
      %v2999 = vadd.f32 %v2961, %v2977
      %v3000 = vadd.f32 %v2962, %v2977
      %v3001 = vadd.f32 %v2963, %v2977
      %v3002 = vadd.f32 %v2964, %v2977
      %v3003 = vadd.f32 %v2965, %v2977
      %v3004 = vadd.f32 %v2966, %v2977
      %v3005 = vadd.f32 %v2967, %v2977
      %v3006 = vadd.f32 %v2968, %v2977
      %v3007 = vadd.f32 %v2969, %v2977
      %v3008 = vadd.f32 %v2970, %v2977
      %v3009 = vadd.f32 %v2971, %v2977
      %v3010 = vadd.f32 %v2972, %v2977
      %v3011 = vmax.f32 %v2979, 0.0
      %v3012 = vmax.f32 %v2980, 0.0
      %v3013 = vmax.f32 %v2981, 0.0
      %v3014 = vmax.f32 %v2982, 0.0
      %v3015 = vmax.f32 %v2983, 0.0
      %v3016 = vmax.f32 %v2984, 0.0
      %v3017 = vmax.f32 %v2985, 0.0
      %v3018 = vmax.f32 %v2986, 0.0
      %v3019 = vmax.f32 %v2987, 0.0
      %v3020 = vmax.f32 %v2988, 0.0
      %v3021 = vmax.f32 %v2989, 0.0
      %v3022 = vmax.f32 %v2990, 0.0
      %v3023 = vmax.f32 %v2991, 0.0
      %v3024 = vmax.f32 %v2992, 0.0
      %v3025 = vmax.f32 %v2993, 0.0
      %v3026 = vmax.f32 %v2994, 0.0
      %v3027 = vmax.f32 %v2995, 0.0
      %v3028 = vmax.f32 %v2996, 0.0
      %v3029 = vmax.f32 %v2997, 0.0
      %v3030 = vmax.f32 %v2998, 0.0
      %v3031 = vmax.f32 %v2999, 0.0
      %v3032 = vmax.f32 %v3000, 0.0
      %v3033 = vmax.f32 %v3001, 0.0
      %v3034 = vmax.f32 %v3002, 0.0
      %v3035 = vmax.f32 %v3003, 0.0
      %v3036 = vmax.f32 %v3004, 0.0
      %v3037 = vmax.f32 %v3005, 0.0
      %v3038 = vmax.f32 %v3006, 0.0
      %v3039 = vmax.f32 %v3007, 0.0
      %v3040 = vmax.f32 %v3008, 0.0
      %v3041 = vmax.f32 %v3009, 0.0
      %v3042 = vmax.f32 %v3010, 0.0
      %3043 = vst.msk [vmem:[%s219] sm:$0xff] %vm957, %v3011
      %3044 = vst.msk [vmem:[%s219 + $0x8] sm:$0xff] %vm957, %v3012
      %3045 = vst.msk [vmem:[%s219 + $0x10] sm:$0xff] %vm957, %v3013
      %3046 = vst.msk [vmem:[%s219 + $0x18] sm:$0xff] %vm957, %v3014
      %3047 = vst.msk [vmem:[%s219 + $0x20] sm:$0xff] %vm957, %v3015
      %3048 = vst.msk [vmem:[%s219 + $0x28] sm:$0xff] %vm957, %v3016
      %3049 = vst.msk [vmem:[%s219 + $0x30] sm:$0xff] %vm957, %v3017
      %3050 = vst.msk [vmem:[%s219 + $0x38] sm:$0xff] %vm957, %v3018
      %3051 = vst.msk [vmem:[%s219 + $0x40] sm:$0xff] %vm957, %v3019
      %3052 = vst.msk [vmem:[%s219 + $0x48] sm:$0xff] %vm957, %v3020
      %3053 = vst.msk [vmem:[%s219 + $0x50] sm:$0xff] %vm957, %v3021
      %3054 = vst.msk [vmem:[%s219 + $0x58] sm:$0xff] %vm957, %v3022
      %3055 = vst.msk [vmem:[%s219 + $0x60] sm:$0xff] %vm957, %v3023
      %3056 = vst.msk [vmem:[%s219 + $0x68] sm:$0xff] %vm957, %v3024
      %3057 = vst.msk [vmem:[%s219 + $0x70] sm:$0xff] %vm957, %v3025
      %3058 = vst.msk [vmem:[%s219 + $0x78] sm:$0xff] %vm957, %v3026
      %3059 = vst.msk [vmem:[%s219 + $0x80] sm:$0xff] %vm957, %v3027
      %3060 = vst.msk [vmem:[%s219 + $0x88] sm:$0xff] %vm957, %v3028
      %3061 = vst.msk [vmem:[%s219 + $0x90] sm:$0xff] %vm957, %v3029
      %3062 = vst.msk [vmem:[%s219 + $0x98] sm:$0xff] %vm957, %v3030
      %3063 = vst.msk [vmem:[%s219 + $0xa0] sm:$0xff] %vm957, %v3031
      %3064 = vst.msk [vmem:[%s219 + $0xa8] sm:$0xff] %vm957, %v3032
      %3065 = vst.msk [vmem:[%s219 + $0xb0] sm:$0xff] %vm957, %v3033
      %3066 = vst.msk [vmem:[%s219 + $0xb8] sm:$0xff] %vm957, %v3034
      %3067 = vst.msk [vmem:[%s219 + $0xc0] sm:$0xff] %vm957, %v3035
      %3068 = vst.msk [vmem:[%s219 + $0xc8] sm:$0xff] %vm957, %v3036
      %3069 = vst.msk [vmem:[%s219 + $0xd0] sm:$0xff] %vm957, %v3037
      %3070 = vst.msk [vmem:[%s219 + $0xd8] sm:$0xff] %vm957, %v3038
      %3071 = vst.msk [vmem:[%s219 + $0xe0] sm:$0xff] %vm957, %v3039
      %3072 = vst.msk [vmem:[%s219 + $0xe8] sm:$0xff] %vm957, %v3040
      %3073 = vst.msk [vmem:[%s219 + $0xf0] sm:$0xff] %vm957, %v3041
      %3074 = vst.msk [vmem:[%s219 + $0xf8] sm:$0xff] %vm957, %v3042
      %s3075 = smul.u32 32, %s20
      %p3076 = scmp.lt.s32.totalorder %s19, 1
      %s3077 = scalar_select %p3076, %s19, 1
      %p3078 = scmp.lt.s32.totalorder %s3075, 31
      %s3079 = scalar_select %p3078, %s3075, 31
      %s3080 = smul.addr %s3077, 32
      %s3081 = sadd.s32 %s3079, %s3080
      %s3082 = smul.addr %s3081, 8
      %s3083 = scalar_lea.vmem %s4, %s3082
      // Predicated region
      $region37: #{up_forward.1} parent=35 // pred_check
        %p3084 = pneg %p136
      $region38: #{up_forward.1} parent=35 // pred_check_branch
        %3086 = sbr.rel (%p3084) target = $region40
      $region39: #{up_forward.1} parent=35 // pred_region
        %s3087 = smul.u32 32, %s20
      $region40: #{up_forward.1} parent=35 // pred_fallthru
        _
    $region36: #{up_forward.1} parent=5 // pred_fallthru
      _
    %p3088 = scmp.le.s32.totalorder 2, %s10
    // Predicated region
    $region41: #{up_forward.1} parent=5 // pred_check
      %p3089 = pneg %p3088
    $region42: #{up_forward.1} parent=5 // pred_check_branch
      %3091 = sbr.rel (%p3089) target = $region44
    $region43: #{up_forward.1} parent=5 // pred_region
      %s3092 = ssub.s32 %s10, 2
      // Predicated region
      $region45: #{up_forward.1} parent=43 // pred_check
        %p3093 = pneg %p142
      $region46: #{up_forward.1} parent=43 // pred_check_branch
        %3095 = sbr.rel (%p3093) target = $region48
      $region47: #{up_forward.1} parent=43 // pred_region
        %s3096 = smul.u32 32, %s22
        %p3097 = scmp.lt.s32.totalorder %s21, 1
        %s3098 = scalar_select %p3097, %s21, 1
        %p3099 = scmp.lt.s32.totalorder %s3096, 31
        %s3100 = scalar_select %p3099, %s3096, 31
        %s3101 = smul.addr %s3098, 32
        %s3102 = sadd.s32 %s3100, %s3101
        %s3103 = smul.addr %s3102, 8
        %s3104 = scalar_lea.vmem %s4, %s3103
      $region48: #{up_forward.1} parent=43 // pred_fallthru
        _
    $region44: #{up_forward.1} parent=5 // pred_fallthru
      _
  $region6: #{up_forward.1} parent=0 // loop_footer
    %s14 = sadd.s32 1, %s10
  $region7: #{up_forward.1} parent=0 // loop_footer_branch
    %9 = sbr.rel target = $region3
  $region8: #{up_forward.1} parent=0 // loop_exit
    _

</llo_original>
